<compile_context>
chip_gen: v6e
topology: v6e:2x2x1
jax: 0.10.0
libtpu: 0.0.40
codegen_flags: <defaults>
</compile_context>

<pallas_src>
import functools

import jax
import jax.numpy as jnp
from jax import lax
from jax.experimental import pallas as pl
from jax.experimental.pallas import tpu as pltpu


def _round_up(n, m):
    return ((n + m - 1) // m) * m


def _pad_to(a, shape):
    return jnp.pad(a, [(0, s - d) for d, s in zip(a.shape, shape)])


def rnn_kernel(x_ref, wih0_ref, w01_ref, whh1_ref, b0_ref, b1_ref, wfc_ref, bfc_ref,
               out_ref, h_state, a_scr, s_scr,
               *, last_timestep_only, last_local, unroll):
    """One (batch-block, time-chunk) grid step of the 2-layer tanh RNN + fc head.

    x_ref:   (Tc, Bb, Dp) bf16 time-major chunk (pipelined block)
    wih0:    (Dp, Hp) bf16
    w01:     (Hp, 2*Hp) bf16 = [whh0 | wih1]  (shared-LHS wavefront dot)
    whh1:    (Hp, Hp) bf16
    b0, b1:  (1, Hp) f32 (b_ih + b_hh per layer);  wfc: (Hp, Op) bf16; bfc: (1, Op) f32
    out_ref: (Tc, Bb, Op) f32, or (Bb, Op) f32 when last_timestep_only
    h_state: VMEM (2, Bb, Hp) f32 — hidden state carried ACROSS time chunks
    a_scr:   VMEM (Tc, Bb, Hp) f32 — batched layer-0 input projection
    s_scr:   VMEM (Tc, Bb, Hp) f32 — per-step layer-1 outputs (fc input)
    """
    Tc, Bb, Dp = x_ref.shape
    Hp = whh1_ref.shape[0]
    t_pid = pl.program_id(1)

    # h0 = zeros(layer_dim, B, H): re-init at the first time chunk of EVERY batch block
    # (time axis is the inner grid axis, so this fires once per batch block).
    @pl.when(t_pid == 0)
    def _init():
        h_state[...] = jnp.zeros_like(h_state)

    # ---- hoisted layer-0 input projection (+bias) for the whole chunk: one tall matmul
    x2 = x_ref[...].reshape(Tc * Bb, Dp)                       # bf16, tile-preserving
    a0 = jnp.dot(x2, wih0_ref[...],
                 preferred_element_type=jnp.float32) + b0_ref[...]
    a_scr[...] = a0.reshape(Tc, Bb, Hp)

    w01 = w01_ref[...]            # (Hp, 2*Hp) bf16
    whh1 = whh1_ref[...]          # (Hp, Hp)   bf16
    b1b = jnp.broadcast_to(b1_ref[...], (Bb, Hp))   # hoisted broadcast (not per-iter)

    h0_prev = h_state[0]          # f32, end of previous chunk
    h1_prev = h_state[1]

    # ---- wavefront recurrence: iteration t computes h0[t] and h1[t-1] ----
    # prologue: layer-0 step at local time 0 (layer-1 at t=-1 was done last chunk)
    p0 = jnp.dot(h0_prev.astype(jnp.bfloat16), w01, preferred_element_type=jnp.float32)
    h0_cur = jnp.tanh(a_scr[0] + p0[:, :Hp])

    def step(t, carry):
        h0_c, h1_p = carry        # h0[t-1], h1[t-2]
        # Two independent MXU dots per iteration (overlap fill/drain):
        both = jnp.dot(h0_c.astype(jnp.bfloat16), w01,
                       preferred_element_type=jnp.float32)      # [h0@whh0 | h0@wih1]
        rec1 = jnp.dot(h1_p.astype(jnp.bfloat16), whh1,
                       preferred_element_type=jnp.float32)
        h0_n = jnp.tanh(a_scr[t] + both[:, :Hp])                # h0[t]   (f32 tanh)
        h1_n = jnp.tanh(both[:, Hp:] + rec1 + b1b)              # h1[t-1]
        s_scr[t - 1] = h1_n       # single small VMEM store per step (v5e vst budget)
        return (h0_n, h1_n)

    h0_last, h1_pen = lax.fori_loop(1, Tc, step, (h0_cur, h1_prev), unroll=unroll)

    # epilogue: layer-1 step at local time Tc-1
    pe = jnp.dot(h0_last.astype(jnp.bfloat16), w01, preferred_element_type=jnp.float32)
    rec1e = jnp.dot(h1_pen.astype(jnp.bfloat16), whh1, preferred_element_type=jnp.float32)
    h1_last = jnp.tanh(pe[:, Hp:] + rec1e + b1b)
    s_scr[Tc - 1] = h1_last

    h_state[0] = h0_last
    h_state[1] = h1_last

    # ---- fc head ----
    # TODO(synk): nn.RNN inter-layer dropout (p=0.2) is train-only; eval identity here.
    if last_timestep_only:
        # Only compute/store fc on the chunk containing the true last timestep.
        @pl.when(t_pid == pl.num_programs(1) - 1)
        def _fc():
            y = jnp.dot(s_scr[last_local].astype(jnp.bfloat16), wfc_ref[...],
                        preferred_element_type=jnp.float32) + bfc_ref[...]
            out_ref[...] = y.astype(out_ref.dtype)
    else:
        Op = out_ref.shape[-1]
        y = jnp.dot(s_scr[...].reshape(Tc * Bb, Hp).astype(jnp.bfloat16),
                    wfc_ref[...], preferred_element_type=jnp.float32) + bfc_ref[...]
        out_ref[...] = y.reshape(Tc, Bb, Op).astype(out_ref.dtype)


@functools.partial(jax.jit,
                   static_argnames=("time_chunk", "batch_block", "last_timestep_only"))
def rnn_model_forward(x, params, *, time_chunk=64, batch_block=None,
                      last_timestep_only=False):
    """x: (B, T, D) batch-first. Returns (B, T, O), or (B, O) if last_timestep_only.

    batch_block: optional batch-block size; set (e.g. ceil(B/2)) on v7x to shard the
    batch across both TensorCores via the "parallel" grid axis.
    """
    B, T, D = x.shape
    H = params["whh0"].shape[0]
    O = params["wfc"].shape[1]

    # Padded sizes. Bb padded to 16 so the bf16 x tile and the (Tc,Bb,.)->(Tc*Bb,.)
    # collapse stay (16,128)-tile aligned; H/O padded to 128 lanes for dense stores.
    if batch_block is None:
        Bb = _round_up(B, 16)
    else:
        Bb = _round_up(min(batch_block, B), 16)
    nb = -(-B // Bb)
    Bp = nb * Bb
    Dp = _round_up(D, 8)
    Hp = _round_up(H, 128)
    Op = _round_up(O, 128)

    def usage_bytes(tc):
        w = 2 * (Dp * Hp + 2 * Hp * Hp + Hp * Hp + Hp * Op)      # bf16 resident weights
        bias = 4 * (2 * Hp + Op)
        xb = 2 * 2 * tc * Bb * Dp                                # 2x-buffered bf16 x chunk
        ob = 2 * 4 * (Bb * Op if last_timestep_only else tc * Bb * Op)
        scr = 4 * (2 * Bb * Hp + 2 * tc * Bb * Hp)               # h_state + a_scr + s_scr
        return w + bias + xb + ob + scr

    # Big time chunk (amortize grid-step overhead, fill MXU), capped by VMEM budget
    # chosen to fit v7x's 64 MiB physical VMEM with headroom (plenty on v5e/v6e).
    budget = 40 * 1024 * 1024
    Tc = max(1, min(time_chunk, T))
    while Tc > 8 and usage_bytes(Tc) > budget:
        Tc = max(8, Tc // 2)
    T_pad = _round_up(T, Tc)
    nt = T_pad // Tc
    last_local = (T - 1) % Tc
    vmem_limit = int(min(48 * 1024 * 1024,
                         max(16 * 1024 * 1024, usage_bytes(Tc) + 8 * 1024 * 1024)))

    # x: batch-first -> time-major, bf16 (consumed at the MXU in bf16 anyway).
    x_tm = jnp.transpose(x, (1, 0, 2)).astype(jnp.bfloat16)
    x_tm = _pad_to(x_tm, (T_pad, Bp, Dp))

    bf16, f32 = jnp.bfloat16, jnp.float32
    # Zero-padded weights: padded lanes/rows contribute 0, padded hidden lanes stay 0
    # through tanh(0)=0. bf16 weights + bf16-cast h on the MXU, f32 accumulation;
    # keep whh* in f32 instead if accuracy at long T is tight.
    wih0 = _pad_to(params["wih0"], (Dp, Hp)).astype(bf16)
    whh0 = _pad_to(params["whh0"], (Hp, Hp)).astype(bf16)
    wih1 = _pad_to(params["wih1"], (Hp, Hp)).astype(bf16)
    w01 = jnp.concatenate([whh0, wih1], axis=1)                  # (Hp, 2*Hp)
    whh1 = _pad_to(params["whh1"], (Hp, Hp)).astype(bf16)
    wfc = _pad_to(params["wfc"], (Hp, Op)).astype(bf16)
    b0 = _pad_to(params["b0"], (1, Hp)).astype(f32)
    b1 = _pad_to(params["b1"], (1, Hp)).astype(f32)
    bfc = _pad_to(params["bfc"], (1, Op)).astype(f32)

    whole_vmem = pl.BlockSpec(memory_space=pltpu.MemorySpace.VMEM)

    if last_timestep_only:
        out_shape = jax.ShapeDtypeStruct((Bp, Op), f32)
        out_spec = pl.BlockSpec((Bb, Op), lambda b, t: (b, 0))
    else:
        out_shape = jax.ShapeDtypeStruct((T_pad, Bp, Op), f32)
        out_spec = pl.BlockSpec((Tc, Bb, Op), lambda b, t: (t, b, 0))

    kernel = functools.partial(rnn_kernel,
                               last_timestep_only=last_timestep_only,
                               last_local=last_local,
                               unroll=max(1, min(8, Tc - 1)))

    out_raw = pl.pallas_call(
        kernel,
        out_shape=out_shape,
        grid_spec=pltpu.PrefetchScalarGridSpec(
            num_scalar_prefetch=0,
            grid=(nb, nt),
            in_specs=[
                pl.BlockSpec((Tc, Bb, Dp), lambda b, t: (t, b, 0)),  # x chunk (pipelined)
                whole_vmem, whole_vmem, whole_vmem,                  # wih0, w01, whh1
                whole_vmem, whole_vmem,                              # b0, b1
                whole_vmem, whole_vmem,                              # wfc, bfc
            ],
            out_specs=out_spec,
            scratch_shapes=[
                pltpu.VMEM((2, Bb, Hp), f32),    # hidden state across time chunks
                pltpu.VMEM((Tc, Bb, Hp), f32),   # batched layer-0 input projection
                pltpu.VMEM((Tc, Bb, Hp), f32),   # per-step layer-1 outputs (fc input)
            ],
        ),
        compiler_params=pltpu.CompilerParams(
            # Batch blocks are independent ("parallel": both TCs on v7x); the time axis
            # is a true recurrence -> must stay "arbitrary".
            dimension_semantics=("parallel", "arbitrary"),
            vmem_limit_bytes=vmem_limit,
        ),
    )(x_tm, wih0, w01, whh1, b0, b1, wfc, bfc)

    if last_timestep_only:
        return out_raw[:B, :O]
    return jnp.transpose(out_raw[:T, :B, :O], (1, 0, 2))


def init_params(key, input_dim, hidden_dim, output_dim):
    """Deterministic init, PyTorch-like shapes (stored transposed for x @ W)."""
    ks = jax.random.split(key, 10)
    s = 1.0 / jnp.sqrt(hidden_dim)

    def u(k, shape):
        return jax.random.uniform(k, shape, jnp.float32, -s, s)

    wih0 = u(ks[0], (input_dim, hidden_dim))
    whh0 = u(ks[1], (hidden_dim, hidden_dim))
    b0 = u(ks[2], (1, hidden_dim)) + u(ks[3], (1, hidden_dim))   # b_ih + b_hh
    wih1 = u(ks[4], (hidden_dim, hidden_dim))
    whh1 = u(ks[5], (hidden_dim, hidden_dim))
    b1 = u(ks[6], (1, hidden_dim)) + u(ks[7], (1, hidden_dim))
    wfc = u(ks[8], (hidden_dim, output_dim))
    bfc = u(ks[9], (1, output_dim))
    return {"wih0": wih0, "whh0": whh0, "b0": b0,
            "wih1": wih1, "whh1": whh1, "b1": b1,
            "wfc": wfc, "bfc": bfc}


def rnn_model_reference(x, params):
    """Pure-JAX f32 reference of the same forward pass."""
    B, T, D = x.shape
    H = params["whh0"].shape[0]

    def step(carry, xt):
        h0, h1 = carry
        h0n = jnp.tanh(xt @ params["wih0"] + h0 @ params["whh0"] + params["b0"])
        h1n = jnp.tanh(h0n @ params["wih1"] + h1 @ params["whh1"] + params["b1"])
        return (h0n, h1n), h1n

    h_init = (jnp.zeros((B, H), jnp.float32), jnp.zeros((B, H), jnp.float32))
    _, outs = lax.scan(step, h_init, jnp.transpose(x, (1, 0, 2)))   # (T, B, H)
    outs = jnp.transpose(outs, (1, 0, 2))                           # (B, T, H)
    return outs @ params["wfc"] + params["bfc"]


if __name__ == "__main__":
    B, T, D = 2, 8, 4          # batch, seq, input_dim
    H, O = 32, 1               # hidden_dim, output_dim

    key = jax.random.PRNGKey(0)
    kx, kp = jax.random.split(key)
    x = jax.random.normal(kx, (B, T, D), jnp.float32)
    params = init_params(kp, D, H, O)

    ref = rnn_model_reference(x, params)

    # Multi-chunk path: 2 time chunks -> exercises the cross-chunk hidden-state carry
    # and the wavefront prologue/epilogue at chunk boundaries.
    out = jax.block_until_ready(rnn_model_forward(x, params, time_chunk=4))
    assert out.shape == (B, T, O), out.shape
    err = float(jnp.max(jnp.abs(out - ref)))
    assert err < 5e-2, err     # bf16 MXU inputs, f32 accumulation

    # Default (large) chunk clamped to T: single-chunk path.
    out1 = jax.block_until_ready(rnn_model_forward(x, params))
    err1 = float(jnp.max(jnp.abs(out1 - ref)))
    assert err1 < 5e-2, err1

    # last_timestep_only with T not divisible by Tc: exercises time padding + fc gating.
    out_last = jax.block_until_ready(
        rnn_model_forward(x, params, time_chunk=3, last_timestep_only=True))
    assert out_last.shape == (B, O), out_last.shape
    err2 = float(jnp.max(jnp.abs(out_last - ref[:, -1, :])))
    assert err2 < 5e-2, err2

    print("KERNEL_OK")
</pallas_src>

<mosaic_0001>
module attributes {stable_mosaic.version = 11 : i64} {
  func.func @rnn_kernel(%arg0: i32, %arg1: i32, %arg2: memref<4x16x8xbf16, #tpu.memory_space<vmem>>, %arg3: memref<8x128xbf16, #tpu.memory_space<vmem>>, %arg4: memref<128x256xbf16, #tpu.memory_space<vmem>>, %arg5: memref<128x128xbf16, #tpu.memory_space<vmem>>, %arg6: memref<1x128xf32, #tpu.memory_space<vmem>>, %arg7: memref<1x128xf32, #tpu.memory_space<vmem>>, %arg8: memref<128x128xbf16, #tpu.memory_space<vmem>>, %arg9: memref<1x128xf32, #tpu.memory_space<vmem>>, %arg10: memref<4x16x128xf32, #tpu.memory_space<vmem>>, %arg11: memref<2x16x128xf32, #tpu.memory_space<vmem>>, %arg12: memref<4x16x128xf32, #tpu.memory_space<vmem>>, %arg13: memref<4x16x128xf32, #tpu.memory_space<vmem>>) attributes {dimension_semantics = [#tpu.dimension_semantics<parallel>, #tpu.dimension_semantics<arbitrary>], iteration_bounds = array<i64: 1, 2>, scalar_prefetch = 0 : i64, scratch_operands = 3 : i64, tpu.core_type = #tpu.core_type<tc>, window_params = [{transform_indices = @transform_0, window_bounds = array<i64: 4, 16, 8>}, {pipeline_mode = #tpu.pipeline_mode<synchronous>, transform_indices = @transform_1, window_bounds = array<i64: 8, 128>}, {pipeline_mode = #tpu.pipeline_mode<synchronous>, transform_indices = @transform_2, window_bounds = array<i64: 128, 256>}, {pipeline_mode = #tpu.pipeline_mode<synchronous>, transform_indices = @transform_3, window_bounds = array<i64: 128, 128>}, {pipeline_mode = #tpu.pipeline_mode<synchronous>, transform_indices = @transform_4, window_bounds = array<i64: 1, 128>}, {pipeline_mode = #tpu.pipeline_mode<synchronous>, transform_indices = @transform_5, window_bounds = array<i64: 1, 128>}, {pipeline_mode = #tpu.pipeline_mode<synchronous>, transform_indices = @transform_6, window_bounds = array<i64: 128, 128>}, {pipeline_mode = #tpu.pipeline_mode<synchronous>, transform_indices = @transform_7, window_bounds = array<i64: 1, 128>}, {transform_indices = @transform_8, window_bounds = array<i64: 4, 16, 128>}]} {
    %c0_i32 = arith.constant 0 : i32
    %0 = arith.cmpi eq, %arg1, %c0_i32 : i32
    %1 = arith.extui %0 : i1 to i32
    %c0_i32_0 = arith.constant 0 : i32
    %2 = arith.cmpi ne, %1, %c0_i32_0 : i32
    scf.if %2 {
      %cst_68 = arith.constant 0.000000e+00 : f32
      %112 = vector.broadcast %cst_68 : f32 to vector<2x16x128xf32>
      %c0_69 = arith.constant 0 : index
      %c0_70 = arith.constant 0 : index
      %c0_71 = arith.constant 0 : index
      %113 = vector.load %arg11[%c0_69, %c0_70, %c0_71] : memref<2x16x128xf32, #tpu.memory_space<vmem>>, vector<2x16x128xf32>
      tpu.vector_store %arg11[%c0_69, %c0_70, %c0_71], %112 {strides = array<i32>} : memref<2x16x128xf32, #tpu.memory_space<vmem>>, vector<2x16x128xf32>,
    } else {
    }
    %c0 = arith.constant 0 : index
    %c0_1 = arith.constant 0 : index
    %c0_2 = arith.constant 0 : index
    %3 = vector.load %arg2[%c0, %c0_1, %c0_2] : memref<4x16x8xbf16, #tpu.memory_space<vmem>>, vector<4x16x8xbf16>
    %4 = vector.shape_cast %3 : vector<4x16x8xbf16> to vector<64x8xbf16>
    %c0_3 = arith.constant 0 : index
    %c0_4 = arith.constant 0 : index
    %5 = vector.load %arg3[%c0_3, %c0_4] : memref<8x128xbf16, #tpu.memory_space<vmem>>, vector<8x128xbf16>
    %cst = arith.constant dense<0.000000e+00> : vector<64x128xf32>
    %6 = tpu.matmul %4, %5, %cst {dimension_numbers = #tpu.dot_dimension_numbers<[1], [0], [0], [1], [0, 0, 1, 1], [], []>} : vector<64x8xbf16>, vector<8x128xbf16>, vector<64x128xf32> -> vector<64x128xf32>
    %c0_5 = arith.constant 0 : index
    %c0_6 = arith.constant 0 : index
    %7 = vector.load %arg6[%c0_5, %c0_6] : memref<1x128xf32, #tpu.memory_space<vmem>>, vector<1x128xf32>
    %8 = vector.broadcast %7 : vector<1x128xf32> to vector<64x128xf32>
    %9 = arith.addf %6, %8 : vector<64x128xf32>
    %10 = vector.shape_cast %9 : vector<64x128xf32> to vector<4x16x128xf32>
    %c0_7 = arith.constant 0 : index
    %c0_8 = arith.constant 0 : index
    %c0_9 = arith.constant 0 : index
    %11 = vector.load %arg12[%c0_7, %c0_8, %c0_9] : memref<4x16x128xf32, #tpu.memory_space<vmem>>, vector<4x16x128xf32>
    tpu.vector_store %arg12[%c0_7, %c0_8, %c0_9], %10 {strides = array<i32>} : memref<4x16x128xf32, #tpu.memory_space<vmem>>, vector<4x16x128xf32>,
    %c0_10 = arith.constant 0 : index
    %c0_11 = arith.constant 0 : index
    %12 = vector.load %arg4[%c0_10, %c0_11] : memref<128x256xbf16, #tpu.memory_space<vmem>>, vector<128x256xbf16>
    %c0_12 = arith.constant 0 : index
    %c0_13 = arith.constant 0 : index
    %13 = vector.load %arg5[%c0_12, %c0_13] : memref<128x128xbf16, #tpu.memory_space<vmem>>, vector<128x128xbf16>
    %c0_14 = arith.constant 0 : index
    %c0_15 = arith.constant 0 : index
    %14 = vector.load %arg7[%c0_14, %c0_15] : memref<1x128xf32, #tpu.memory_space<vmem>>, vector<1x128xf32>
    %15 = vector.shape_cast %14 : vector<1x128xf32> to vector<1x128xf32>
    %16 = vector.broadcast %15 : vector<1x128xf32> to vector<16x128xf32>
    %c0_16 = arith.constant 0 : index
    %c0_17 = arith.constant 0 : index
    %c0_18 = arith.constant 0 : index
    %17 = vector.load %arg11[%c0_16, %c0_17, %c0_18] : memref<2x16x128xf32, #tpu.memory_space<vmem>>, vector<1x16x128xf32>
    %18 = vector.shape_cast %17 : vector<1x16x128xf32> to vector<16x128xf32>
    %c1 = arith.constant 1 : index
    %c0_19 = arith.constant 0 : index
    %c0_20 = arith.constant 0 : index
    %19 = vector.load %arg11[%c1, %c0_19, %c0_20] : memref<2x16x128xf32, #tpu.memory_space<vmem>>, vector<1x16x128xf32>
    %20 = vector.shape_cast %19 : vector<1x16x128xf32> to vector<16x128xf32>
    %21 = arith.truncf %18 : vector<16x128xf32> to vector<16x128xbf16>
    %cst_21 = arith.constant dense<0.000000e+00> : vector<16x256xf32>
    %22 = tpu.matmul %21, %12, %cst_21 {dimension_numbers = #tpu.dot_dimension_numbers<[1], [0], [0], [1], [0, 0, 1, 1], [], []>} : vector<16x128xbf16>, vector<128x256xbf16>, vector<16x256xf32> -> vector<16x256xf32>
    %c0_22 = arith.constant 0 : index
    %c0_23 = arith.constant 0 : index
    %c0_24 = arith.constant 0 : index
    %23 = vector.load %arg12[%c0_22, %c0_23, %c0_24] : memref<4x16x128xf32, #tpu.memory_space<vmem>>, vector<1x16x128xf32>
    %24 = vector.shape_cast %23 : vector<1x16x128xf32> to vector<16x128xf32>
    %25 = vector.extract_strided_slice %22 {offsets = [0, 0], sizes = [16, 128], strides = [1, 1]} : vector<16x256xf32> to vector<16x128xf32>
    %26 = arith.addf %24, %25 : vector<16x128xf32>
    %27 = math.tanh %26 : vector<16x128xf32>
    %c1_i32 = arith.constant 1 : i32
    %28 = arith.truncf %27 : vector<16x128xf32> to vector<16x128xbf16>
    %cst_25 = arith.constant dense<0.000000e+00> : vector<16x256xf32>
    %29 = tpu.matmul %28, %12, %cst_25 {dimension_numbers = #tpu.dot_dimension_numbers<[1], [0], [0], [1], [0, 0, 1, 1], [], []>} : vector<16x128xbf16>, vector<128x256xbf16>, vector<16x256xf32> -> vector<16x256xf32>
    %30 = arith.truncf %20 : vector<16x128xf32> to vector<16x128xbf16>
    %cst_26 = arith.constant dense<0.000000e+00> : vector<16x128xf32>
    %31 = tpu.matmul %30, %13, %cst_26 {dimension_numbers = #tpu.dot_dimension_numbers<[1], [0], [0], [1], [0, 0, 1, 1], [], []>} : vector<16x128xbf16>, vector<128x128xbf16>, vector<16x128xf32> -> vector<16x128xf32>
    %32 = arith.index_cast %c1_i32 : i32 to index
    %c0_27 = arith.constant 0 : index
    %c0_28 = arith.constant 0 : index
    %33 = vector.load %arg12[%32, %c0_27, %c0_28] : memref<4x16x128xf32, #tpu.memory_space<vmem>>, vector<1x16x128xf32>
    %34 = vector.shape_cast %33 : vector<1x16x128xf32> to vector<16x128xf32>
    %35 = vector.extract_strided_slice %29 {offsets = [0, 0], sizes = [16, 128], strides = [1, 1]} : vector<16x256xf32> to vector<16x128xf32>
    %36 = arith.addf %34, %35 : vector<16x128xf32>
    %37 = math.tanh %36 : vector<16x128xf32>
    %38 = vector.extract_strided_slice %29 {offsets = [0, 128], sizes = [16, 128], strides = [1, 1]} : vector<16x256xf32> to vector<16x128xf32>
    %39 = arith.addf %38, %31 : vector<16x128xf32>
    %40 = arith.addf %39, %16 : vector<16x128xf32>
    %41 = math.tanh %40 : vector<16x128xf32>
    %c1_i32_29 = arith.constant 1 : i32
    %42 = arith.subi %c1_i32, %c1_i32_29 : i32
    %43 = arith.index_cast %42 : i32 to index
    %c0_30 = arith.constant 0 : index
    %c0_31 = arith.constant 0 : index
    %44 = vector.load %arg13[%43, %c0_30, %c0_31] : memref<4x16x128xf32, #tpu.memory_space<vmem>>, vector<1x16x128xf32>
    %45 = vector.shape_cast %44 : vector<1x16x128xf32> to vector<16x128xf32>
    %46 = vector.shape_cast %41 : vector<16x128xf32> to vector<1x16x128xf32>
    tpu.vector_store %arg13[%43, %c0_30, %c0_31], %46 {strides = array<i32>} : memref<4x16x128xf32, #tpu.memory_space<vmem>>, vector<1x16x128xf32>,
    %c2_i32 = arith.constant 2 : i32
    %47 = arith.truncf %37 : vector<16x128xf32> to vector<16x128xbf16>
    %cst_32 = arith.constant dense<0.000000e+00> : vector<16x256xf32>
    %48 = tpu.matmul %47, %12, %cst_32 {dimension_numbers = #tpu.dot_dimension_numbers<[1], [0], [0], [1], [0, 0, 1, 1], [], []>} : vector<16x128xbf16>, vector<128x256xbf16>, vector<16x256xf32> -> vector<16x256xf32>
    %49 = arith.truncf %41 : vector<16x128xf32> to vector<16x128xbf16>
    %cst_33 = arith.constant dense<0.000000e+00> : vector<16x128xf32>
    %50 = tpu.matmul %49, %13, %cst_33 {dimension_numbers = #tpu.dot_dimension_numbers<[1], [0], [0], [1], [0, 0, 1, 1], [], []>} : vector<16x128xbf16>, vector<128x128xbf16>, vector<16x128xf32> -> vector<16x128xf32>
    %51 = arith.index_cast %c2_i32 : i32 to index
    %c0_34 = arith.constant 0 : index
    %c0_35 = arith.constant 0 : index
    %52 = vector.load %arg12[%51, %c0_34, %c0_35] : memref<4x16x128xf32, #tpu.memory_space<vmem>>, vector<1x16x128xf32>
    %53 = vector.shape_cast %52 : vector<1x16x128xf32> to vector<16x128xf32>
    %54 = vector.extract_strided_slice %48 {offsets = [0, 0], sizes = [16, 128], strides = [1, 1]} : vector<16x256xf32> to vector<16x128xf32>
    %55 = arith.addf %53, %54 : vector<16x128xf32>
    %56 = math.tanh %55 : vector<16x128xf32>
    %57 = vector.extract_strided_slice %48 {offsets = [0, 128], sizes = [16, 128], strides = [1, 1]} : vector<16x256xf32> to vector<16x128xf32>
    %58 = arith.addf %57, %50 : vector<16x128xf32>
    %59 = arith.addf %58, %16 : vector<16x128xf32>
    %60 = math.tanh %59 : vector<16x128xf32>
    %c1_i32_36 = arith.constant 1 : i32
    %61 = arith.subi %c2_i32, %c1_i32_36 : i32
    %62 = arith.index_cast %61 : i32 to index
    %c0_37 = arith.constant 0 : index
    %c0_38 = arith.constant 0 : index
    %63 = vector.load %arg13[%62, %c0_37, %c0_38] : memref<4x16x128xf32, #tpu.memory_space<vmem>>, vector<1x16x128xf32>
    %64 = vector.shape_cast %63 : vector<1x16x128xf32> to vector<16x128xf32>
    %65 = vector.shape_cast %60 : vector<16x128xf32> to vector<1x16x128xf32>
    tpu.vector_store %arg13[%62, %c0_37, %c0_38], %65 {strides = array<i32>} : memref<4x16x128xf32, #tpu.memory_space<vmem>>, vector<1x16x128xf32>,
    %c3_i32 = arith.constant 3 : i32
    %66 = arith.truncf %56 : vector<16x128xf32> to vector<16x128xbf16>
    %cst_39 = arith.constant dense<0.000000e+00> : vector<16x256xf32>
    %67 = tpu.matmul %66, %12, %cst_39 {dimension_numbers = #tpu.dot_dimension_numbers<[1], [0], [0], [1], [0, 0, 1, 1], [], []>} : vector<16x128xbf16>, vector<128x256xbf16>, vector<16x256xf32> -> vector<16x256xf32>
    %68 = arith.truncf %60 : vector<16x128xf32> to vector<16x128xbf16>
    %cst_40 = arith.constant dense<0.000000e+00> : vector<16x128xf32>
    %69 = tpu.matmul %68, %13, %cst_40 {dimension_numbers = #tpu.dot_dimension_numbers<[1], [0], [0], [1], [0, 0, 1, 1], [], []>} : vector<16x128xbf16>, vector<128x128xbf16>, vector<16x128xf32> -> vector<16x128xf32>
    %70 = arith.index_cast %c3_i32 : i32 to index
    %c0_41 = arith.constant 0 : index
    %c0_42 = arith.constant 0 : index
    %71 = vector.load %arg12[%70, %c0_41, %c0_42] : memref<4x16x128xf32, #tpu.memory_space<vmem>>, vector<1x16x128xf32>
    %72 = vector.shape_cast %71 : vector<1x16x128xf32> to vector<16x128xf32>
    %73 = vector.extract_strided_slice %67 {offsets = [0, 0], sizes = [16, 128], strides = [1, 1]} : vector<16x256xf32> to vector<16x128xf32>
    %74 = arith.addf %72, %73 : vector<16x128xf32>
    %75 = math.tanh %74 : vector<16x128xf32>
    %76 = vector.extract_strided_slice %67 {offsets = [0, 128], sizes = [16, 128], strides = [1, 1]} : vector<16x256xf32> to vector<16x128xf32>
    %77 = arith.addf %76, %69 : vector<16x128xf32>
    %78 = arith.addf %77, %16 : vector<16x128xf32>
    %79 = math.tanh %78 : vector<16x128xf32>
    %c1_i32_43 = arith.constant 1 : i32
    %80 = arith.subi %c3_i32, %c1_i32_43 : i32
    %81 = arith.index_cast %80 : i32 to index
    %c0_44 = arith.constant 0 : index
    %c0_45 = arith.constant 0 : index
    %82 = vector.load %arg13[%81, %c0_44, %c0_45] : memref<4x16x128xf32, #tpu.memory_space<vmem>>, vector<1x16x128xf32>
    %83 = vector.shape_cast %82 : vector<1x16x128xf32> to vector<16x128xf32>
    %84 = vector.shape_cast %79 : vector<16x128xf32> to vector<1x16x128xf32>
    tpu.vector_store %arg13[%81, %c0_44, %c0_45], %84 {strides = array<i32>} : memref<4x16x128xf32, #tpu.memory_space<vmem>>, vector<1x16x128xf32>,
    %c3_i32_46 = arith.constant 3 : i32
    %85 = arith.truncf %75 : vector<16x128xf32> to vector<16x128xbf16>
    %cst_47 = arith.constant dense<0.000000e+00> : vector<16x256xf32>
    %86 = tpu.matmul %85, %12, %cst_47 {dimension_numbers = #tpu.dot_dimension_numbers<[1], [0], [0], [1], [0, 0, 1, 1], [], []>} : vector<16x128xbf16>, vector<128x256xbf16>, vector<16x256xf32> -> vector<16x256xf32>
    %87 = arith.truncf %79 : vector<16x128xf32> to vector<16x128xbf16>
    %cst_48 = arith.constant dense<0.000000e+00> : vector<16x128xf32>
    %88 = tpu.matmul %87, %13, %cst_48 {dimension_numbers = #tpu.dot_dimension_numbers<[1], [0], [0], [1], [0, 0, 1, 1], [], []>} : vector<16x128xbf16>, vector<128x128xbf16>, vector<16x128xf32> -> vector<16x128xf32>
    %89 = vector.extract_strided_slice %86 {offsets = [0, 128], sizes = [16, 128], strides = [1, 1]} : vector<16x256xf32> to vector<16x128xf32>
    %90 = arith.addf %89, %88 : vector<16x128xf32>
    %91 = arith.addf %90, %16 : vector<16x128xf32>
    %92 = math.tanh %91 : vector<16x128xf32>
    %c3 = arith.constant 3 : index
    %c0_49 = arith.constant 0 : index
    %c0_50 = arith.constant 0 : index
    %93 = vector.load %arg13[%c3, %c0_49, %c0_50] : memref<4x16x128xf32, #tpu.memory_space<vmem>>, vector<1x16x128xf32>
    %94 = vector.shape_cast %93 : vector<1x16x128xf32> to vector<16x128xf32>
    %95 = vector.shape_cast %92 : vector<16x128xf32> to vector<1x16x128xf32>
    tpu.vector_store %arg13[%c3, %c0_49, %c0_50], %95 {strides = array<i32>} : memref<4x16x128xf32, #tpu.memory_space<vmem>>, vector<1x16x128xf32>,
    %c0_51 = arith.constant 0 : index
    %c0_52 = arith.constant 0 : index
    %c0_53 = arith.constant 0 : index
    %96 = vector.load %arg11[%c0_51, %c0_52, %c0_53] : memref<2x16x128xf32, #tpu.memory_space<vmem>>, vector<1x16x128xf32>
    %97 = vector.shape_cast %96 : vector<1x16x128xf32> to vector<16x128xf32>
    %98 = vector.shape_cast %75 : vector<16x128xf32> to vector<1x16x128xf32>
    tpu.vector_store %arg11[%c0_51, %c0_52, %c0_53], %98 {strides = array<i32>} : memref<2x16x128xf32, #tpu.memory_space<vmem>>, vector<1x16x128xf32>,
    %c1_54 = arith.constant 1 : index
    %c0_55 = arith.constant 0 : index
    %c0_56 = arith.constant 0 : index
    %99 = vector.load %arg11[%c1_54, %c0_55, %c0_56] : memref<2x16x128xf32, #tpu.memory_space<vmem>>, vector<1x16x128xf32>
    %100 = vector.shape_cast %99 : vector<1x16x128xf32> to vector<16x128xf32>
    %101 = vector.shape_cast %92 : vector<16x128xf32> to vector<1x16x128xf32>
    tpu.vector_store %arg11[%c1_54, %c0_55, %c0_56], %101 {strides = array<i32>} : memref<2x16x128xf32, #tpu.memory_space<vmem>>, vector<1x16x128xf32>,
    %c0_57 = arith.constant 0 : index
    %c0_58 = arith.constant 0 : index
    %c0_59 = arith.constant 0 : index
    %102 = vector.load %arg13[%c0_57, %c0_58, %c0_59] : memref<4x16x128xf32, #tpu.memory_space<vmem>>, vector<4x16x128xf32>
    %103 = vector.shape_cast %102 : vector<4x16x128xf32> to vector<64x128xf32>
    %104 = arith.truncf %103 : vector<64x128xf32> to vector<64x128xbf16>
    %c0_60 = arith.constant 0 : index
    %c0_61 = arith.constant 0 : index
    %105 = vector.load %arg8[%c0_60, %c0_61] : memref<128x128xbf16, #tpu.memory_space<vmem>>, vector<128x128xbf16>
    %cst_62 = arith.constant dense<0.000000e+00> : vector<64x128xf32>
    %106 = tpu.matmul %104, %105, %cst_62 {dimension_numbers = #tpu.dot_dimension_numbers<[1], [0], [0], [1], [0, 0, 1, 1], [], []>} : vector<64x128xbf16>, vector<128x128xbf16>, vector<64x128xf32> -> vector<64x128xf32>
    %c0_63 = arith.constant 0 : index
    %c0_64 = arith.constant 0 : index
    %107 = vector.load %arg9[%c0_63, %c0_64] : memref<1x128xf32, #tpu.memory_space<vmem>>, vector<1x128xf32>
    %108 = vector.broadcast %107 : vector<1x128xf32> to vector<64x128xf32>
    %109 = arith.addf %106, %108 : vector<64x128xf32>
    %110 = vector.shape_cast %109 : vector<64x128xf32> to vector<4x16x128xf32>
    %c0_65 = arith.constant 0 : index
    %c0_66 = arith.constant 0 : index
    %c0_67 = arith.constant 0 : index
    %111 = vector.load %arg10[%c0_65, %c0_66, %c0_67] : memref<4x16x128xf32, #tpu.memory_space<vmem>>, vector<4x16x128xf32>
    tpu.vector_store %arg10[%c0_65, %c0_66, %c0_67], %110 {strides = array<i32>} : memref<4x16x128xf32, #tpu.memory_space<vmem>>, vector<4x16x128xf32>,
    return
  }
  func.func @transform_0(%arg0: i32, %arg1: i32) -> (i32, i32, i32) {
    %c0_i32 = arith.constant 0 : i32
    %c0_i32_0 = arith.constant 0 : i32
    return %arg1, %arg0, %c0_i32 : i32, i32, i32
  }
  func.func @transform_1(%arg0: i32, %arg1: i32) -> (i32, i32) {
    %c0_i32 = arith.constant 0 : i32
    %c0_i32_0 = arith.constant 0 : i32
    %c0_i32_1 = arith.constant 0 : i32
    return %c0_i32, %c0_i32_0 : i32, i32
  }
  func.func @transform_2(%arg0: i32, %arg1: i32) -> (i32, i32) {
    %c0_i32 = arith.constant 0 : i32
    %c0_i32_0 = arith.constant 0 : i32
    %c0_i32_1 = arith.constant 0 : i32
    return %c0_i32, %c0_i32_0 : i32, i32
  }
  func.func @transform_3(%arg0: i32, %arg1: i32) -> (i32, i32) {
    %c0_i32 = arith.constant 0 : i32
    %c0_i32_0 = arith.constant 0 : i32
    %c0_i32_1 = arith.constant 0 : i32
    return %c0_i32, %c0_i32_0 : i32, i32
  }
  func.func @transform_4(%arg0: i32, %arg1: i32) -> (i32, i32) {
    %c0_i32 = arith.constant 0 : i32
    %c0_i32_0 = arith.constant 0 : i32
    %c0_i32_1 = arith.constant 0 : i32
    return %c0_i32, %c0_i32_0 : i32, i32
  }
  func.func @transform_5(%arg0: i32, %arg1: i32) -> (i32, i32) {
    %c0_i32 = arith.constant 0 : i32
    %c0_i32_0 = arith.constant 0 : i32
    %c0_i32_1 = arith.constant 0 : i32
    return %c0_i32, %c0_i32_0 : i32, i32
  }
  func.func @transform_6(%arg0: i32, %arg1: i32) -> (i32, i32) {
    %c0_i32 = arith.constant 0 : i32
    %c0_i32_0 = arith.constant 0 : i32
    %c0_i32_1 = arith.constant 0 : i32
    return %c0_i32, %c0_i32_0 : i32, i32
  }
  func.func @transform_7(%arg0: i32, %arg1: i32) -> (i32, i32) {
    %c0_i32 = arith.constant 0 : i32
    %c0_i32_0 = arith.constant 0 : i32
    %c0_i32_1 = arith.constant 0 : i32
    return %c0_i32, %c0_i32_0 : i32, i32
  }
  func.func @transform_8(%arg0: i32, %arg1: i32) -> (i32, i32, i32) {
    %c0_i32 = arith.constant 0 : i32
    %c0_i32_0 = arith.constant 0 : i32
    return %arg1, %arg0, %c0_i32 : i32, i32, i32
  }
}

</mosaic_0001>

<llo_original>
// kernel: rnn_model_forward.1
$region0: #{rnn_model_forward.1}
  #allocation0 [shape = 'u32[]', space=smem, size = 0x4, offset = 0x4, fixed_abs, tag = 'smem constant byte address 0x4 - core index']
  #allocation1 [shape = 'u32[144,128]{1,0:T(1,128)}', space=vmem, size = 0x12000, scoped, tag = 'internal scratch']
  #allocation2 [shape = 'f32[2,16,128]{2,1,0:T(8,128)}', space=vmem, size = 0x4000, scoped, tag = 'scratch operand']
  #allocation3 [shape = 'f32[4,16,128]{2,1,0:T(8,128)}', space=vmem, size = 0x8000, scoped, tag = 'scratch operand']
  #allocation4 [shape = 'f32[4,16,128]{2,1,0:T(8,128)}', space=vmem, size = 0x8000, scoped, tag = 'scratch operand']
  %s0 = inlined_call_operand.vmem [shape: bf16[8,16,8], index: 0, kind: input, shape index: {}]
  %s1 = inlined_call_operand.vmem [shape: bf16[8,128], index: 1, kind: input, shape index: {}]
  %s2 = inlined_call_operand.vmem [shape: bf16[128,256], index: 2, kind: input, shape index: {}]
  %s3 = inlined_call_operand.vmem [shape: bf16[128,128], index: 3, kind: input, shape index: {}]
  %s4 = inlined_call_operand.vmem [shape: f32[1,128], index: 4, kind: input, shape index: {}]
  %s5 = inlined_call_operand.vmem [shape: f32[1,128], index: 5, kind: input, shape index: {}]
  %s6 = inlined_call_operand.vmem [shape: bf16[128,128], index: 6, kind: input, shape index: {}]
  %s7 = inlined_call_operand.vmem [shape: f32[1,128], index: 7, kind: input, shape index: {}]
  %s8 = inlined_call_operand.vmem [shape: f32[8,16,128], index: 8, kind: output, shape index: {}]
  %s9 = sld [smem:[#allocation0]]
  $region69: #{rnn_model_forward.1} parent=0
    _
  %s11 = ssub.s32 1, %s9
  %s12 = scalar_select 0, %s11, %s9
  loop: start=0, step=1, limit=4
  $region2: #{rnn_model_forward.1} parent=0 // loop_pre_header
    _
  $region3: #{rnn_model_forward.1} parent=0 // loop_header
    %s14 = sphi 0, %s18
    %p15 = scmp.ge.s32.totalorder %s14, 4
    %s21 = sphi 0, %s33
    %s22 = sphi 0, %s29
    %s23 = sphi 0, %s21
    %s24 = sphi 0, %s22
    %s25 = sphi 0, %s23
    %s26 = sphi 0, %s24
    %s38 = sphi 0, %s40
    %s41 = sphi 0, %s38
    %s42 = sphi 0, %s41
    %s58 = sphi 0, %s42
    %s62 = sphi 0, %s62
    %s64 = sphi 0, %s62
    %s65 = sphi 0, %s64
    %s79 = sphi 0, %s65
    %s83 = sphi 0, %s83
    %s85 = sphi 0, %s83
    %s86 = sphi 0, %s85
    %s100 = sphi 0, %s86
    %s104 = sphi 0, %s104
    %s106 = sphi 0, %s104
    %s107 = sphi 0, %s106
    %s121 = sphi 0, %s107
    %s125 = sphi 0, %s125
    %s127 = sphi 0, %s125
    %s128 = sphi 0, %s127
    %s142 = sphi 0, %s128
    %s146 = sphi 0, %s146
    %s148 = sphi 0, %s146
    %s149 = sphi 0, %s148
    %s163 = sphi 0, %s149
    %s167 = sphi 0, %s167
    %s169 = sphi 0, %s167
    %s170 = sphi 0, %s169
    %s184 = sphi 0, %s170
    %s188 = sphi 0, %s188
    %s190 = sphi 0, %s188
    %s191 = sphi 0, %s190
    %s205 = sphi 0, %s191
    %s213 = sphi 0, %s215
    %s216 = sphi 0, %s213
    %s217 = sphi 0, %s216
    %s233 = sphi 0, %s217
  $region4: #{rnn_model_forward.1} parent=0 // loop_header_branch
    %17 = sbr.rel (%p15) target = $region8
  $region5: #{rnn_model_forward.1} parent=0 // loop_body
    %s19 = ssub.s32 %s14, 1
    %s20 = ssub.s32 %s14, 2
    %s27 = sadd.s32 1, %s22
    %p28 = scmp.ge.s32.totalorder %s27, 2
    %s29 = scalar_select %p28, 0, %s27
    %s30 = sadd.s32 1, %s21
    %s31 = scalar_select %p28, %s30, %s21
    %p32 = scmp.ge.s32.totalorder %s31, 1
    %s33 = scalar_select %p32, 0, %s31
    %s34 = ssub.s32 %s22, %s29
    %s35 = ssub.s32 %s21, %s33
    %s36 = sor.u32 %s34, %s35
    %p37 = scmp.eq.s32.totalorder %s36, 0
    %s39 = sadd.s32 %s38, 1
    %s40 = scalar_select %p37, %s38, %s39
    %p43 = pneg %p37
    %p44 = scmp.eq.s32.totalorder %s14, 1
    %p45 = por %p43, %p44
    %p46 = scmp.ne.s32.totalorder %s38, %s41
    %p47 = scmp.eq.s32.totalorder %s14, 0
    %p48 = por %p46, %p47
    %p49 = scmp.ne.s32.totalorder %s38, %s41
    %p50 = scmp.eq.s32.totalorder %s19, 1
    %p51 = por %p49, %p50
    %p52 = scmp.ne.s32.totalorder %s41, %s42
    %p53 = scmp.eq.s32.totalorder %s19, 0
    %p54 = por %p52, %p53
    %p55 = scmp.ne.s32.totalorder %s41, %s42
    %p56 = scmp.eq.s32.totalorder %s20, 1
    %p57 = por %p55, %p56
    %p59 = scmp.ne.s32.totalorder %s42, %s58
    %p60 = scmp.eq.s32.totalorder %s20, 0
    %p61 = por %p59, %p60
    %s63 = sadd.s32 %s62, 1
    %p66 = scmp.eq.s32.totalorder %s14, 1
    %p67 = scmp.ne.s32.totalorder %s62, %s64
    %p68 = scmp.eq.s32.totalorder %s14, 0
    %p69 = por %p67, %p68
    %p70 = scmp.ne.s32.totalorder %s62, %s64
    %p71 = scmp.eq.s32.totalorder %s19, 1
    %p72 = por %p70, %p71
    %p73 = scmp.ne.s32.totalorder %s64, %s65
    %p74 = scmp.eq.s32.totalorder %s19, 0
    %p75 = por %p73, %p74
    %p76 = scmp.ne.s32.totalorder %s64, %s65
    %p77 = scmp.eq.s32.totalorder %s20, 1
    %p78 = por %p76, %p77
    %p80 = scmp.ne.s32.totalorder %s65, %s79
    %p81 = scmp.eq.s32.totalorder %s20, 0
    %p82 = por %p80, %p81
    %s84 = sadd.s32 %s83, 1
    %p87 = scmp.eq.s32.totalorder %s14, 1
    %p88 = scmp.ne.s32.totalorder %s83, %s85
    %p89 = scmp.eq.s32.totalorder %s14, 0
    %p90 = por %p88, %p89
    %p91 = scmp.ne.s32.totalorder %s83, %s85
    %p92 = scmp.eq.s32.totalorder %s19, 1
    %p93 = por %p91, %p92
    %p94 = scmp.ne.s32.totalorder %s85, %s86
    %p95 = scmp.eq.s32.totalorder %s19, 0
    %p96 = por %p94, %p95
    %p97 = scmp.ne.s32.totalorder %s85, %s86
    %p98 = scmp.eq.s32.totalorder %s20, 1
    %p99 = por %p97, %p98
    %p101 = scmp.ne.s32.totalorder %s86, %s100
    %p102 = scmp.eq.s32.totalorder %s20, 0
    %p103 = por %p101, %p102
    %s105 = sadd.s32 %s104, 1
    %p108 = scmp.eq.s32.totalorder %s14, 1
    %p109 = scmp.ne.s32.totalorder %s104, %s106
    %p110 = scmp.eq.s32.totalorder %s14, 0
    %p111 = por %p109, %p110
    %p112 = scmp.ne.s32.totalorder %s104, %s106
    %p113 = scmp.eq.s32.totalorder %s19, 1
    %p114 = por %p112, %p113
    %p115 = scmp.ne.s32.totalorder %s106, %s107
    %p116 = scmp.eq.s32.totalorder %s19, 0
    %p117 = por %p115, %p116
    %p118 = scmp.ne.s32.totalorder %s106, %s107
    %p119 = scmp.eq.s32.totalorder %s20, 1
    %p120 = por %p118, %p119
    %p122 = scmp.ne.s32.totalorder %s107, %s121
    %p123 = scmp.eq.s32.totalorder %s20, 0
    %p124 = por %p122, %p123
    %s126 = sadd.s32 %s125, 1
    %p129 = scmp.eq.s32.totalorder %s14, 1
    %p130 = scmp.ne.s32.totalorder %s125, %s127
    %p131 = scmp.eq.s32.totalorder %s14, 0
    %p132 = por %p130, %p131
    %p133 = scmp.ne.s32.totalorder %s125, %s127
    %p134 = scmp.eq.s32.totalorder %s19, 1
    %p135 = por %p133, %p134
    %p136 = scmp.ne.s32.totalorder %s127, %s128
    %p137 = scmp.eq.s32.totalorder %s19, 0
    %p138 = por %p136, %p137
    %p139 = scmp.ne.s32.totalorder %s127, %s128
    %p140 = scmp.eq.s32.totalorder %s20, 1
    %p141 = por %p139, %p140
    %p143 = scmp.ne.s32.totalorder %s128, %s142
    %p144 = scmp.eq.s32.totalorder %s20, 0
    %p145 = por %p143, %p144
    %s147 = sadd.s32 %s146, 1
    %p150 = scmp.eq.s32.totalorder %s14, 1
    %p151 = scmp.ne.s32.totalorder %s146, %s148
    %p152 = scmp.eq.s32.totalorder %s14, 0
    %p153 = por %p151, %p152
    %p154 = scmp.ne.s32.totalorder %s146, %s148
    %p155 = scmp.eq.s32.totalorder %s19, 1
    %p156 = por %p154, %p155
    %p157 = scmp.ne.s32.totalorder %s148, %s149
    %p158 = scmp.eq.s32.totalorder %s19, 0
    %p159 = por %p157, %p158
    %p160 = scmp.ne.s32.totalorder %s148, %s149
    %p161 = scmp.eq.s32.totalorder %s20, 1
    %p162 = por %p160, %p161
    %p164 = scmp.ne.s32.totalorder %s149, %s163
    %p165 = scmp.eq.s32.totalorder %s20, 0
    %p166 = por %p164, %p165
    %s168 = sadd.s32 %s167, 1
    %p171 = scmp.eq.s32.totalorder %s14, 1
    %p172 = scmp.ne.s32.totalorder %s167, %s169
    %p173 = scmp.eq.s32.totalorder %s14, 0
    %p174 = por %p172, %p173
    %p175 = scmp.ne.s32.totalorder %s167, %s169
    %p176 = scmp.eq.s32.totalorder %s19, 1
    %p177 = por %p175, %p176
    %p178 = scmp.ne.s32.totalorder %s169, %s170
    %p179 = scmp.eq.s32.totalorder %s19, 0
    %p180 = por %p178, %p179
    %p181 = scmp.ne.s32.totalorder %s169, %s170
    %p182 = scmp.eq.s32.totalorder %s20, 1
    %p183 = por %p181, %p182
    %p185 = scmp.ne.s32.totalorder %s170, %s184
    %p186 = scmp.eq.s32.totalorder %s20, 0
    %p187 = por %p185, %p186
    %s189 = sadd.s32 %s188, 1
    %p192 = scmp.eq.s32.totalorder %s14, 1
    %p193 = scmp.ne.s32.totalorder %s188, %s190
    %p194 = scmp.eq.s32.totalorder %s14, 0
    %p195 = por %p193, %p194
    %p196 = scmp.ne.s32.totalorder %s188, %s190
    %p197 = scmp.eq.s32.totalorder %s19, 1
    %p198 = por %p196, %p197
    %p199 = scmp.ne.s32.totalorder %s190, %s191
    %p200 = scmp.eq.s32.totalorder %s19, 0
    %p201 = por %p199, %p200
    %p202 = scmp.ne.s32.totalorder %s190, %s191
    %p203 = scmp.eq.s32.totalorder %s20, 1
    %p204 = por %p202, %p203
    %p206 = scmp.ne.s32.totalorder %s191, %s205
    %p207 = scmp.eq.s32.totalorder %s20, 0
    %p208 = por %p206, %p207
    %s209 = ssub.s32 %s22, %s29
    %s210 = ssub.s32 %s21, %s33
    %s211 = sor.u32 %s209, %s210
    %p212 = scmp.eq.s32.totalorder %s211, 0
    %s214 = sadd.s32 %s213, 1
    %s215 = scalar_select %p212, %s213, %s214
    %p218 = pneg %p212
    %p219 = scmp.eq.s32.totalorder %s14, 1
    %p220 = por %p218, %p219
    %p221 = scmp.ne.s32.totalorder %s213, %s216
    %p222 = scmp.eq.s32.totalorder %s14, 0
    %p223 = por %p221, %p222
    %p224 = scmp.ne.s32.totalorder %s213, %s216
    %p225 = scmp.eq.s32.totalorder %s19, 1
    %p226 = por %p224, %p225
    %p227 = scmp.ne.s32.totalorder %s216, %s217
    %p228 = scmp.eq.s32.totalorder %s19, 0
    %p229 = por %p227, %p228
    %p230 = scmp.ne.s32.totalorder %s216, %s217
    %p231 = scmp.eq.s32.totalorder %s20, 1
    %p232 = por %p230, %p231
    %p234 = scmp.ne.s32.totalorder %s217, %s233
    %p235 = scmp.eq.s32.totalorder %s20, 0
    %p236 = por %p234, %p235
    %p237 = scmp.le.s32.totalorder 1, %s14
    %p238 = scmp.lt.s32.totalorder %s14, 3
    %p239 = pnand %p237, %p238
    %p240 = pneg %p239
    // Predicated region
    $region9: #{rnn_model_forward.1} parent=5 // pred_check
      _
    $region10: #{rnn_model_forward.1} parent=5 // pred_check_branch
      %242 = sbr.rel (%p239) target = $region12
    $region11: #{rnn_model_forward.1} parent=5 // pred_region
      %s243 = ssub.s32 %s14, 1
      // Predicated region
      $region13: #{rnn_model_forward.1} parent=11 // pred_check
        %p244 = pneg %p75
      $region14: #{rnn_model_forward.1} parent=11 // pred_check_branch
        %246 = sbr.rel (%p244) target = $region16
      $region15: #{rnn_model_forward.1} parent=11 // pred_region
        _
      $region16: #{rnn_model_forward.1} parent=11 // pred_fallthru
        _
      // Predicated region
      $region17: #{rnn_model_forward.1} parent=11 // pred_check
        %p247 = pneg %p96
      $region18: #{rnn_model_forward.1} parent=11 // pred_check_branch
        %249 = sbr.rel (%p247) target = $region20
      $region19: #{rnn_model_forward.1} parent=11 // pred_region
        _
      $region20: #{rnn_model_forward.1} parent=11 // pred_fallthru
        _
      // Predicated region
      $region21: #{rnn_model_forward.1} parent=11 // pred_check
        %p250 = pneg %p117
      $region22: #{rnn_model_forward.1} parent=11 // pred_check_branch
        %252 = sbr.rel (%p250) target = $region24
      $region23: #{rnn_model_forward.1} parent=11 // pred_region
        _
      $region24: #{rnn_model_forward.1} parent=11 // pred_fallthru
        _
      // Predicated region
      $region25: #{rnn_model_forward.1} parent=11 // pred_check
        %p253 = pneg %p138
      $region26: #{rnn_model_forward.1} parent=11 // pred_check_branch
        %255 = sbr.rel (%p253) target = $region28
      $region27: #{rnn_model_forward.1} parent=11 // pred_region
        _
      $region28: #{rnn_model_forward.1} parent=11 // pred_fallthru
        _
      // Predicated region
      $region29: #{rnn_model_forward.1} parent=11 // pred_check
        %p256 = pneg %p159
      $region30: #{rnn_model_forward.1} parent=11 // pred_check_branch
        %258 = sbr.rel (%p256) target = $region32
      $region31: #{rnn_model_forward.1} parent=11 // pred_region
        _
      $region32: #{rnn_model_forward.1} parent=11 // pred_fallthru
        _
      // Predicated region
      $region33: #{rnn_model_forward.1} parent=11 // pred_check
        %p259 = pneg %p180
      $region34: #{rnn_model_forward.1} parent=11 // pred_check_branch
        %261 = sbr.rel (%p259) target = $region36
      $region35: #{rnn_model_forward.1} parent=11 // pred_region
        _
      $region36: #{rnn_model_forward.1} parent=11 // pred_fallthru
        _
      // Predicated region
      $region37: #{rnn_model_forward.1} parent=11 // pred_check
        %p262 = pneg %p201
      $region38: #{rnn_model_forward.1} parent=11 // pred_check_branch
        %264 = sbr.rel (%p262) target = $region40
      $region39: #{rnn_model_forward.1} parent=11 // pred_region
        _
      $region40: #{rnn_model_forward.1} parent=11 // pred_fallthru
        _
    $region12: #{rnn_model_forward.1} parent=5 // pred_fallthru
      _
    %p265 = scmp.lt.s32.totalorder %s14, 2
    // Predicated region
    $region41: #{rnn_model_forward.1} parent=5 // pred_check
      %p266 = pneg %p265
    $region42: #{rnn_model_forward.1} parent=5 // pred_check_branch
      %268 = sbr.rel (%p266) target = $region44
    $region43: #{rnn_model_forward.1} parent=5 // pred_region
      // Predicated region
      $region45: #{rnn_model_forward.1} parent=43 // pred_check
        %p269 = pneg %p48
      $region46: #{rnn_model_forward.1} parent=43 // pred_check_branch
        %271 = sbr.rel (%p269) target = $region48
      $region47: #{rnn_model_forward.1} parent=43 // pred_region
        %s272 = smul.u32 4, %s22
        %s273 = smul.u32 2, %s21
        %p274 = scmp.lt.s32.totalorder %s272, 7
        %s275 = scalar_select %p274, %s272, 7
        %p276 = scmp.lt.s32.totalorder %s273, 1
        %s277 = scalar_select %p276, %s273, 1
        %s278 = smul.addr %s275, 2
        %s279 = sadd.s32 %s277, %s278
        %s280 = smul.addr %s279, 4
        %s281 = scalar_lea.vmem %s0, %s280
        %s282 = smul.u32 4, %s22
        %s283 = smul.u32 2, %s21
      $region48: #{rnn_model_forward.1} parent=43 // pred_fallthru
        _
    $region44: #{rnn_model_forward.1} parent=5 // pred_fallthru
      _
    %p284 = scmp.le.s32.totalorder 1, %s14
    %p285 = scmp.lt.s32.totalorder %s14, 3
    %p286 = pnand %p284, %p285
    %p287 = pneg %p286
    // Predicated region
    $region49: #{rnn_model_forward.1} parent=5 // pred_check
      _
    $region50: #{rnn_model_forward.1} parent=5 // pred_check_branch
      %289 = sbr.rel (%p286) target = $region52
    $region51: #{rnn_model_forward.1} parent=5 // pred_region
      %s290 = ssub.s32 %s14, 1
      %s291 = smul.u32 4, %s24
      %s292 = smul.u32 2, %s23
      %p293 = scmp.lt.s32.totalorder %s291, 7
      %s294 = scalar_select %p293, %s291, 7
      %p295 = scmp.lt.s32.totalorder %s292, 1
      %s296 = scalar_select %p295, %s292, 1
      %s297 = smul.addr %s294, 2
      %s298 = sadd.s32 %s296, %s297
      %s299 = smul.addr %s298, 4
      %s300 = scalar_lea.vmem %s0, %s299
      %p301 = pneg %p54
      %p302 = pneg %p51
      %p303 = pneg %p75
      %p304 = pneg %p72
      %p305 = pneg %p96
      %p306 = pneg %p93
      %p307 = pneg %p117
      %p308 = pneg %p114
      %p309 = pneg %p138
      %p310 = pneg %p135
      %p311 = pneg %p159
      %p312 = pneg %p156
      %p313 = pneg %p180
      %p314 = pneg %p177
      %p315 = pneg %p201
      %p316 = pneg %p198
      %p317 = pneg %p229
      %p318 = pneg %p226
      %s319 = smul.u32 4, %s24
      %s320 = smul.u32 2, %s23
      %p321 = scmp.lt.s32.totalorder %s319, 7
      %s322 = scalar_select %p321, %s319, 7
      %p323 = scmp.lt.s32.totalorder %s320, 1
      %s324 = scalar_select %p323, %s320, 1
      %s325 = smul.addr %s322, 2
      %s326 = sadd.s32 %s324, %s325
      %s327 = smul.addr %s326, 8
      %s328 = scalar_lea.vmem %s8, %s327
      %s329 = smul.u32 4, %s24
      %s330 = smul.u32 2, %s23
      %p331 = scmp.lt.s32.totalorder %s329, 7
      %s332 = scalar_select %p331, %s329, 7
      %p333 = scmp.lt.s32.totalorder %s330, 1
      %s334 = scalar_select %p333, %s330, 1
      %s335 = smul.addr %s332, 2
      %s336 = sadd.s32 %s334, %s335
      %s337 = smul.addr %s336, 4
      %s338 = scalar_lea.vmem %s0, %s337
      %s339 = smul.u32 4, %s24
      %s340 = smul.u32 2, %s23
      %s341 = smul.u32 4, %s24
      %s342 = smul.u32 2, %s23
      %p343 = scmp.lt.s32.totalorder %s341, 7
      %s344 = scalar_select %p343, %s341, 7
      %p345 = scmp.lt.s32.totalorder %s342, 1
      %s346 = scalar_select %p345, %s342, 1
      %s347 = smul.addr %s344, 2
      %s348 = sadd.s32 %s346, %s347
      %s349 = smul.addr %s348, 8
      %s350 = scalar_lea.vmem %s8, %s349
      %s351 = smul.u32 4, %s24
      %s352 = smul.u32 2, %s23
      %p354 = scmp.eq.s32.totalorder %s24, 0
      // Predicated region
      $region53: #{rnn_model_forward.1} parent=51 // pred_check
        %p355 = pneg %p354
      $region54: #{rnn_model_forward.1} parent=51 // pred_check_branch
        %357 = sbr.rel (%p355) target = $region56
      $region55: #{rnn_model_forward.1} parent=51 // pred_region
        %358 = vst [vmem:[#allocation2] sm:$0xff] 0.0
        %359 = vst [vmem:[#allocation2 + $0x8] sm:$0xff] 0.0
        %360 = vst [vmem:[#allocation2 + $0x10] sm:$0xff] 0.0
        %361 = vst [vmem:[#allocation2 + $0x18] sm:$0xff] 0.0
      $region56: #{rnn_model_forward.1} parent=51 // pred_fallthru
        _
      %v362 = vld [vmem:[%s338] sm:$0xf]
      %v363 = vld [vmem:[%s338 + $0x4] sm:$0xf]
      %v364 = vld [vmem:[%s338 + $0x8] sm:$0xf]
      %v365 = vld [vmem:[%s338 + $0xc] sm:$0xf]
      %v366 = vld [vmem:[%s338 + $0x10] sm:$0xf]
      %v367 = vld [vmem:[%s338 + $0x14] sm:$0xf]
      %v368 = vld [vmem:[%s338 + $0x18] sm:$0xf]
      %v369 = vld [vmem:[%s338 + $0x1c] sm:$0xf]
      %v370 = vld [vmem:[%s1] sm:$0xf]
      %v371 = vld [vmem:[%s4] sm:$0x1]
      %v373 = vlaneseq
      %v374 = vshrl.u32 %v373, 7
      %v375 = vsub.s32 0, %v374
      %v376 = vrot.slane %v371, %v375
      %v386 = vunpack.c.l.b16 %v362
      %v387 = vunpack.c.l.b16 %v363
      %v388 = vunpack.c.l.b16 %v364
      %v389 = vunpack.c.l.b16 %v365
      %v390 = vunpack.c.l.b16 %v366
      %v391 = vunpack.c.l.b16 %v367
      %v392 = vunpack.c.l.b16 %v368
      %v393 = vunpack.c.l.b16 %v369
      %v394 = vpack.c.b16 %v387, %v386
      %v395 = vpack.c.b16 %v389, %v388
      %v396 = vpack.c.b16 %v391, %v390
      %v397 = vpack.c.b16 %v393, %v392
      %vm398 = vcmask 64512
      %v400 = vsel %vm398, %v394, 0
      %v403 = vsel %vm398, %v395, 0
      %v406 = vsel %vm398, %v396, 0
      %v409 = vsel %vm398, %v397, 0
      %vm411 = vcmask 1043456
      %v413 = vsel %vm411, %v370, 0
      %415 = vmatprep.subr.bf16.mxu0 0
      %416 = vmatpush1.bf16.msra.mxu0 0
      %417 = vmatprep.subr.bf16.mxu0 0
      %418 = vmatpush1.bf16.msra.mxu0 0
      %419 = vmatprep.subr.bf16.mxu0 0
      %420 = vmatpush1.bf16.msra.mxu0 0
      %421 = vmatprep.subr.bf16.mxu0 0
      %422 = vmatpush1.bf16.msra.mxu0 0
      %423 = vmatprep.subr.bf16.mxu0 0
      %424 = vmatpush1.bf16.msra.mxu0 0
      %425 = vmatprep.subr.bf16.mxu0 0
      %426 = vmatpush1.bf16.msra.mxu0 0
      %427 = vmatprep.subr.bf16.mxu0 0
      %428 = vmatpush1.bf16.msra.mxu0 0
      %429 = vmatprep.subr.bf16.mxu0 0
      %430 = vmatpush1.bf16.msra.mxu0 %v413
      %431 = vmatprep.subr.bf16.mxu0 0
      %432 = vmatpush2.bf16.msra.mxu0 0
      %433 = vmatprep.subr.bf16.mxu0 0
      %434 = vmatpush2.bf16.msra.mxu0 0
      %435 = vmatprep.subr.bf16.mxu0 0
      %436 = vmatpush2.bf16.msra.mxu0 0
      %437 = vmatprep.subr.bf16.mxu0 0
      %438 = vmatpush2.bf16.msra.mxu0 0
      %439 = vmatprep.subr.bf16.mxu0 0
      %440 = vmatpush2.bf16.msra.mxu0 0
      %441 = vmatprep.subr.bf16.mxu0 0
      %442 = vmatpush2.bf16.msra.mxu0 0
      %443 = vmatprep.subr.bf16.mxu0 0
      %444 = vmatpush2.bf16.msra.mxu0 0
      %445 = vmatprep.subr.bf16.mxu0 0
      %446 = vmatpush2.bf16.msra.mxu0 0
      %447 = vmatprep.mubr.bf16.mxu0 0
      %448 = vmatmul.mubr.bf16.gmra.mxu0 %v400
      %v449 = vpop.f32.mrf.mxu0
      %v450 = vadd.f32 %v376, %v449
      %v451 = vpop.f32.mrf.mxu0
      %v452 = vpop.f32.mrf.mxu0
      %v453 = vadd.f32 %v376, %v452
      %v454 = vpop.f32.mrf.mxu0
      %455 = vmatprep.mubr.bf16.mxu0 0
      %456 = vmatmul.mubr.bf16.gmra.mxu0 %v403
      %v457 = vpop.f32.mrf.mxu0
      %v458 = vadd.f32 %v376, %v457
      %v459 = vpop.f32.mrf.mxu0
      %v460 = vpop.f32.mrf.mxu0
      %v461 = vadd.f32 %v376, %v460
      %v462 = vpop.f32.mrf.mxu0
      %463 = vmatprep.mubr.bf16.mxu0 0
      %464 = vmatmul.mubr.bf16.gmra.mxu0 %v406
      %v465 = vpop.f32.mrf.mxu0
      %v466 = vadd.f32 %v376, %v465
      %v467 = vpop.f32.mrf.mxu0
      %v468 = vpop.f32.mrf.mxu0
      %v469 = vadd.f32 %v376, %v468
      %v470 = vpop.f32.mrf.mxu0
      %471 = vmatprep.mubr.bf16.mxu0 0
      %472 = vmatmul.mubr.bf16.gmra.mxu0 %v409
      %v473 = vpop.f32.mrf.mxu0
      %v474 = vadd.f32 %v376, %v473
      %v475 = vpop.f32.mrf.mxu0
      %v476 = vpop.f32.mrf.mxu0
      %v477 = vadd.f32 %v376, %v476
      %v478 = vpop.f32.mrf.mxu0
      %479 = vdwg.mxu0
      %480 = vst [vmem:[#allocation3] sm:$0xff] %v450
      %481 = vst [vmem:[#allocation3 + $0x8] sm:$0xff] %v453
      %482 = vst [vmem:[#allocation3 + $0x10] sm:$0xff] %v458
      %483 = vst [vmem:[#allocation3 + $0x18] sm:$0xff] %v461
      %484 = vst [vmem:[#allocation3 + $0x20] sm:$0xff] %v466
      %485 = vst [vmem:[#allocation3 + $0x28] sm:$0xff] %v469
      %486 = vst [vmem:[#allocation3 + $0x30] sm:$0xff] %v474
      %487 = vst [vmem:[#allocation3 + $0x38] sm:$0xff] %v477
      %v488 = vld [vmem:[%s2] sm:$0xff]
      %v489 = vld [vmem:[%s2 + $0x8] sm:$0xff]
      %v490 = vld [vmem:[%s2 + $0x10] sm:$0xff]
      %v491 = vld [vmem:[%s2 + $0x18] sm:$0xff]
      %v492 = vld [vmem:[%s2 + $0x20] sm:$0xff]
      %v493 = vld [vmem:[%s2 + $0x28] sm:$0xff]
      %v494 = vld [vmem:[%s2 + $0x30] sm:$0xff]
      %v495 = vld [vmem:[%s2 + $0x38] sm:$0xff]
      %v496 = vld [vmem:[%s2 + $0x40] sm:$0xff]
      %v497 = vld [vmem:[%s2 + $0x48] sm:$0xff]
      %v498 = vld [vmem:[%s2 + $0x50] sm:$0xff]
      %v499 = vld [vmem:[%s2 + $0x58] sm:$0xff]
      %v500 = vld [vmem:[%s2 + $0x60] sm:$0xff]
      %v501 = vld [vmem:[%s2 + $0x68] sm:$0xff]
      %v502 = vld [vmem:[%s2 + $0x70] sm:$0xff]
      %v503 = vld [vmem:[%s2 + $0x78] sm:$0xff]
      %v504 = vld [vmem:[%s3] sm:$0xf]
      %v505 = vld [vmem:[%s3 + $0x4] sm:$0xf]
      %v506 = vld [vmem:[%s3 + $0x8] sm:$0xf]
      %v507 = vld [vmem:[%s3 + $0xc] sm:$0xf]
      %v508 = vld [vmem:[%s3 + $0x10] sm:$0xf]
      %v509 = vld [vmem:[%s3 + $0x14] sm:$0xf]
      %v510 = vld [vmem:[%s3 + $0x18] sm:$0xf]
      %v511 = vld [vmem:[%s3 + $0x1c] sm:$0xf]
      %v512 = vld [vmem:[%s3 + $0x20] sm:$0xf]
      %v513 = vld [vmem:[%s3 + $0x24] sm:$0xf]
      %v514 = vld [vmem:[%s3 + $0x28] sm:$0xf]
      %v515 = vld [vmem:[%s3 + $0x2c] sm:$0xf]
      %v516 = vld [vmem:[%s3 + $0x30] sm:$0xf]
      %v517 = vld [vmem:[%s3 + $0x34] sm:$0xf]
      %v518 = vld [vmem:[%s3 + $0x38] sm:$0xf]
      %v519 = vld [vmem:[%s3 + $0x3c] sm:$0xf]
      %v520 = vld [vmem:[%s5] sm:$0x1]
      %v522 = vlaneseq
      %v523 = vshrl.u32 %v522, 7
      %v524 = vsub.s32 0, %v523
      %v525 = vrot.slane %v520, %v524
      %v527 = vld [vmem:[#allocation2] sm:$0xff]
      %v528 = vld [vmem:[#allocation2 + $0x8] sm:$0xff]
      %s529 = scalar_lea.vmem [#allocation2], 16
      %v530 = vld [vmem:[%s529] sm:$0xff]
      %v531 = vld [vmem:[%s529 + $0x8] sm:$0xff]
      %v532 = vpack.c.bf16 %v528, %v527
      %v549 = vunpack.c.l.b16 %v488
      %v550 = vunpack.c.h.b16 %v488
      %v551 = vunpack.c.l.b16 %v489
      %v552 = vunpack.c.h.b16 %v489
      %v553 = vunpack.c.l.b16 %v490
      %v554 = vunpack.c.h.b16 %v490
      %v555 = vunpack.c.l.b16 %v491
      %v556 = vunpack.c.h.b16 %v491
      %v557 = vunpack.c.l.b16 %v492
      %v558 = vunpack.c.h.b16 %v492
      %v559 = vunpack.c.l.b16 %v493
      %v560 = vunpack.c.h.b16 %v493
      %v561 = vunpack.c.l.b16 %v494
      %v562 = vunpack.c.h.b16 %v494
      %v563 = vunpack.c.l.b16 %v495
      %v564 = vunpack.c.h.b16 %v495
      %v565 = vunpack.c.l.b16 %v496
      %v566 = vunpack.c.h.b16 %v496
      %v567 = vunpack.c.l.b16 %v497
      %v568 = vunpack.c.h.b16 %v497
      %v569 = vunpack.c.l.b16 %v498
      %v570 = vunpack.c.h.b16 %v498
      %v571 = vunpack.c.l.b16 %v499
      %v572 = vunpack.c.h.b16 %v499
      %v573 = vunpack.c.l.b16 %v500
      %v574 = vunpack.c.h.b16 %v500
      %v575 = vunpack.c.l.b16 %v501
      %v576 = vunpack.c.h.b16 %v501
      %v577 = vunpack.c.l.b16 %v502
      %v578 = vunpack.c.h.b16 %v502
      %v579 = vunpack.c.l.b16 %v503
      %v580 = vunpack.c.h.b16 %v503
      %v581 = vpack.c.b16 %v551, %v549
      %v582 = vpack.c.b16 %v552, %v550
      %v583 = vpack.c.b16 %v555, %v553
      %v584 = vpack.c.b16 %v556, %v554
      %v585 = vpack.c.b16 %v559, %v557
      %v586 = vpack.c.b16 %v560, %v558
      %v587 = vpack.c.b16 %v563, %v561
      %v588 = vpack.c.b16 %v564, %v562
      %v589 = vpack.c.b16 %v567, %v565
      %v590 = vpack.c.b16 %v568, %v566
      %v591 = vpack.c.b16 %v571, %v569
      %v592 = vpack.c.b16 %v572, %v570
      %v593 = vpack.c.b16 %v575, %v573
      %v594 = vpack.c.b16 %v576, %v574
      %v595 = vpack.c.b16 %v579, %v577
      %v596 = vpack.c.b16 %v580, %v578
      %613 = vmatprep.subr.bf16.mxu0 %v596
      %614 = vmatpush1.bf16.msra.mxu0 %v595
      %615 = vmatprep.subr.bf16.mxu0 %v594
      %616 = vmatpush1.bf16.msra.mxu0 %v593
      %617 = vmatprep.subr.bf16.mxu0 %v592
      %618 = vmatpush1.bf16.msra.mxu0 %v591
      %619 = vmatprep.subr.bf16.mxu0 %v590
      %620 = vmatpush1.bf16.msra.mxu0 %v589
      %621 = vmatprep.subr.bf16.mxu0 %v588
      %622 = vmatpush1.bf16.msra.mxu0 %v587
      %623 = vmatprep.subr.bf16.mxu0 %v586
      %624 = vmatpush1.bf16.msra.mxu0 %v585
      %625 = vmatprep.subr.bf16.mxu0 %v584
      %626 = vmatpush1.bf16.msra.mxu0 %v583
      %627 = vmatprep.subr.bf16.mxu0 %v582
      %628 = vmatpush1.bf16.msra.mxu0 %v581
      %629 = vmatprep.subr.bf16.mxu0 0
      %630 = vmatpush2.bf16.msra.mxu0 0
      %631 = vmatprep.subr.bf16.mxu0 0
      %632 = vmatpush2.bf16.msra.mxu0 0
      %633 = vmatprep.subr.bf16.mxu0 0
      %634 = vmatpush2.bf16.msra.mxu0 0
      %635 = vmatprep.subr.bf16.mxu0 0
      %636 = vmatpush2.bf16.msra.mxu0 0
      %637 = vmatprep.subr.bf16.mxu0 0
      %638 = vmatpush2.bf16.msra.mxu0 0
      %639 = vmatprep.subr.bf16.mxu0 0
      %640 = vmatpush2.bf16.msra.mxu0 0
      %641 = vmatprep.subr.bf16.mxu0 0
      %642 = vmatpush2.bf16.msra.mxu0 0
      %643 = vmatprep.subr.bf16.mxu0 0
      %644 = vmatpush2.bf16.msra.mxu0 0
      %645 = vmatprep.mubr.bf16.mxu0 0
      %646 = vmatmul.mubr.bf16.gmra.mxu0 %v532
      %v647 = vpop.f32.mrf.mxu0
      %v648 = vadd.f32 0.0, %v647
      %v649 = vpop.f32.mrf.mxu0
      %v650 = vpop.f32.mrf.mxu0
      %v651 = vadd.f32 0.0, %v650
      %v652 = vpop.f32.mrf.mxu0
      %653 = vdwg.mxu0
      %v654 = vld [vmem:[#allocation3] sm:$0xff]
      %v655 = vld [vmem:[#allocation3 + $0x8] sm:$0xff]
      %v656 = vadd.f32 %v654, %v648
      %v657 = vadd.f32 %v655, %v651
      %v658 = vtanh.pop %v656
      %v659 = vtanh.pop %v657
      %v660 = vpack.c.bf16 %v659, %v658
      %661 = vmatprep.subr.bf16.mxu0 %v596
      %662 = vmatpush1.bf16.msra.mxu0 %v595
      %663 = vmatprep.subr.bf16.mxu0 %v594
      %664 = vmatpush1.bf16.msra.mxu0 %v593
      %665 = vmatprep.subr.bf16.mxu0 %v592
      %666 = vmatpush1.bf16.msra.mxu0 %v591
      %667 = vmatprep.subr.bf16.mxu0 %v590
      %668 = vmatpush1.bf16.msra.mxu0 %v589
      %669 = vmatprep.subr.bf16.mxu0 %v588
      %670 = vmatpush1.bf16.msra.mxu0 %v587
      %671 = vmatprep.subr.bf16.mxu0 %v586
      %672 = vmatpush1.bf16.msra.mxu0 %v585
      %673 = vmatprep.subr.bf16.mxu0 %v584
      %674 = vmatpush1.bf16.msra.mxu0 %v583
      %675 = vmatprep.subr.bf16.mxu0 %v582
      %676 = vmatpush1.bf16.msra.mxu0 %v581
      %677 = vmatprep.subr.bf16.mxu0 0
      %678 = vmatpush2.bf16.msra.mxu0 0
      %679 = vmatprep.subr.bf16.mxu0 0
      %680 = vmatpush2.bf16.msra.mxu0 0
      %681 = vmatprep.subr.bf16.mxu0 0
      %682 = vmatpush2.bf16.msra.mxu0 0
      %683 = vmatprep.subr.bf16.mxu0 0
      %684 = vmatpush2.bf16.msra.mxu0 0
      %685 = vmatprep.subr.bf16.mxu0 0
      %686 = vmatpush2.bf16.msra.mxu0 0
      %687 = vmatprep.subr.bf16.mxu0 0
      %688 = vmatpush2.bf16.msra.mxu0 0
      %689 = vmatprep.subr.bf16.mxu0 0
      %690 = vmatpush2.bf16.msra.mxu0 0
      %691 = vmatprep.subr.bf16.mxu0 0
      %692 = vmatpush2.bf16.msra.mxu0 0
      %693 = vmatprep.mubr.bf16.mxu0 0
      %694 = vmatmul.mubr.bf16.gmra.mxu0 %v660
      %v695 = vpop.f32.mrf.mxu0
      %v696 = vadd.f32 0.0, %v695
      %v697 = vpop.f32.mrf.mxu0
      %v698 = vadd.f32 0.0, %v697
      %v699 = vpop.f32.mrf.mxu0
      %v700 = vadd.f32 0.0, %v699
      %v701 = vpop.f32.mrf.mxu0
      %v702 = vadd.f32 0.0, %v701
      %703 = vdwg.mxu0
      %v704 = vpack.c.bf16 %v531, %v530
      %v721 = vunpack.c.l.b16 %v504
      %v722 = vunpack.c.l.b16 %v505
      %v723 = vunpack.c.l.b16 %v506
      %v724 = vunpack.c.l.b16 %v507
      %v725 = vunpack.c.l.b16 %v508
      %v726 = vunpack.c.l.b16 %v509
      %v727 = vunpack.c.l.b16 %v510
      %v728 = vunpack.c.l.b16 %v511
      %v729 = vunpack.c.l.b16 %v512
      %v730 = vunpack.c.l.b16 %v513
      %v731 = vunpack.c.l.b16 %v514
      %v732 = vunpack.c.l.b16 %v515
      %v733 = vunpack.c.l.b16 %v516
      %v734 = vunpack.c.l.b16 %v517
      %v735 = vunpack.c.l.b16 %v518
      %v736 = vunpack.c.l.b16 %v519
      %v737 = vpack.c.b16 %v722, %v721
      %v738 = vpack.c.b16 %v724, %v723
      %v739 = vpack.c.b16 %v726, %v725
      %v740 = vpack.c.b16 %v728, %v727
      %v741 = vpack.c.b16 %v730, %v729
      %v742 = vpack.c.b16 %v732, %v731
      %v743 = vpack.c.b16 %v734, %v733
      %v744 = vpack.c.b16 %v736, %v735
      %753 = vmatprep.subr.bf16.mxu0 0
      %754 = vmatpush1.bf16.msra.mxu0 %v744
      %755 = vmatprep.subr.bf16.mxu0 0
      %756 = vmatpush1.bf16.msra.mxu0 %v743
      %757 = vmatprep.subr.bf16.mxu0 0
      %758 = vmatpush1.bf16.msra.mxu0 %v742
      %759 = vmatprep.subr.bf16.mxu0 0
      %760 = vmatpush1.bf16.msra.mxu0 %v741
      %761 = vmatprep.subr.bf16.mxu0 0
      %762 = vmatpush1.bf16.msra.mxu0 %v740
      %763 = vmatprep.subr.bf16.mxu0 0
      %764 = vmatpush1.bf16.msra.mxu0 %v739
      %765 = vmatprep.subr.bf16.mxu0 0
      %766 = vmatpush1.bf16.msra.mxu0 %v738
      %767 = vmatprep.subr.bf16.mxu0 0
      %768 = vmatpush1.bf16.msra.mxu0 %v737
      %769 = vmatprep.subr.bf16.mxu0 0
      %770 = vmatpush2.bf16.msra.mxu0 0
      %771 = vmatprep.subr.bf16.mxu0 0
      %772 = vmatpush2.bf16.msra.mxu0 0
      %773 = vmatprep.subr.bf16.mxu0 0
      %774 = vmatpush2.bf16.msra.mxu0 0
      %775 = vmatprep.subr.bf16.mxu0 0
      %776 = vmatpush2.bf16.msra.mxu0 0
      %777 = vmatprep.subr.bf16.mxu0 0
      %778 = vmatpush2.bf16.msra.mxu0 0
      %779 = vmatprep.subr.bf16.mxu0 0
      %780 = vmatpush2.bf16.msra.mxu0 0
      %781 = vmatprep.subr.bf16.mxu0 0
      %782 = vmatpush2.bf16.msra.mxu0 0
      %783 = vmatprep.subr.bf16.mxu0 0
      %784 = vmatpush2.bf16.msra.mxu0 0
      %785 = vmatprep.mubr.bf16.mxu0 0
      %786 = vmatmul.mubr.bf16.gmra.mxu0 %v704
      %v787 = vpop.f32.mrf.mxu0
      %v788 = vadd.f32 0.0, %v787
      %v789 = vpop.f32.mrf.mxu0
      %v790 = vpop.f32.mrf.mxu0
      %v791 = vadd.f32 0.0, %v790
      %v792 = vpop.f32.mrf.mxu0
      %793 = vdwg.mxu0
      %s794 = scalar_lea.vmem [#allocation3], 16
      %v795 = vld [vmem:[%s794] sm:$0xff]
      %v796 = vld [vmem:[%s794 + $0x8] sm:$0xff]
      %v797 = vadd.f32 %v795, %v696
      %v798 = vadd.f32 %v796, %v700
      %v799 = vtanh.pop %v797
      %v800 = vtanh.pop %v798
      %v801 = vadd.f32 %v698, %v788
      %v802 = vadd.f32 %v702, %v791
      %v803 = vadd.f32 %v801, %v525
      %v804 = vadd.f32 %v802, %v525
      %v805 = vtanh.pop %v803
      %v806 = vtanh.pop %v804
      %807 = vst [vmem:[#allocation4] sm:$0xff] %v805
      %808 = vst [vmem:[#allocation4 + $0x8] sm:$0xff] %v806
      %v809 = vpack.c.bf16 %v800, %v799
      %810 = vmatprep.subr.bf16.mxu0 %v596
      %811 = vmatpush1.bf16.msra.mxu0 %v595
      %812 = vmatprep.subr.bf16.mxu0 %v594
      %813 = vmatpush1.bf16.msra.mxu0 %v593
      %814 = vmatprep.subr.bf16.mxu0 %v592
      %815 = vmatpush1.bf16.msra.mxu0 %v591
      %816 = vmatprep.subr.bf16.mxu0 %v590
      %817 = vmatpush1.bf16.msra.mxu0 %v589
      %818 = vmatprep.subr.bf16.mxu0 %v588
      %819 = vmatpush1.bf16.msra.mxu0 %v587
      %820 = vmatprep.subr.bf16.mxu0 %v586
      %821 = vmatpush1.bf16.msra.mxu0 %v585
      %822 = vmatprep.subr.bf16.mxu0 %v584
      %823 = vmatpush1.bf16.msra.mxu0 %v583
      %824 = vmatprep.subr.bf16.mxu0 %v582
      %825 = vmatpush1.bf16.msra.mxu0 %v581
      %826 = vmatprep.subr.bf16.mxu0 0
      %827 = vmatpush2.bf16.msra.mxu0 0
      %828 = vmatprep.subr.bf16.mxu0 0
      %829 = vmatpush2.bf16.msra.mxu0 0
      %830 = vmatprep.subr.bf16.mxu0 0
      %831 = vmatpush2.bf16.msra.mxu0 0
      %832 = vmatprep.subr.bf16.mxu0 0
      %833 = vmatpush2.bf16.msra.mxu0 0
      %834 = vmatprep.subr.bf16.mxu0 0
      %835 = vmatpush2.bf16.msra.mxu0 0
      %836 = vmatprep.subr.bf16.mxu0 0
      %837 = vmatpush2.bf16.msra.mxu0 0
      %838 = vmatprep.subr.bf16.mxu0 0
      %839 = vmatpush2.bf16.msra.mxu0 0
      %840 = vmatprep.subr.bf16.mxu0 0
      %841 = vmatpush2.bf16.msra.mxu0 0
      %842 = vmatprep.mubr.bf16.mxu0 0
      %843 = vmatmul.mubr.bf16.gmra.mxu0 %v809
      %v844 = vpop.f32.mrf.mxu0
      %v845 = vadd.f32 0.0, %v844
      %v846 = vpop.f32.mrf.mxu0
      %v847 = vadd.f32 0.0, %v846
      %v848 = vpop.f32.mrf.mxu0
      %v849 = vadd.f32 0.0, %v848
      %v850 = vpop.f32.mrf.mxu0
      %v851 = vadd.f32 0.0, %v850
      %852 = vdwg.mxu0
      %v853 = vpack.c.bf16 %v806, %v805
      %854 = vmatprep.subr.bf16.mxu0 0
      %855 = vmatpush1.bf16.msra.mxu0 %v744
      %856 = vmatprep.subr.bf16.mxu0 0
      %857 = vmatpush1.bf16.msra.mxu0 %v743
      %858 = vmatprep.subr.bf16.mxu0 0
      %859 = vmatpush1.bf16.msra.mxu0 %v742
      %860 = vmatprep.subr.bf16.mxu0 0
      %861 = vmatpush1.bf16.msra.mxu0 %v741
      %862 = vmatprep.subr.bf16.mxu0 0
      %863 = vmatpush1.bf16.msra.mxu0 %v740
      %864 = vmatprep.subr.bf16.mxu0 0
      %865 = vmatpush1.bf16.msra.mxu0 %v739
      %866 = vmatprep.subr.bf16.mxu0 0
      %867 = vmatpush1.bf16.msra.mxu0 %v738
      %868 = vmatprep.subr.bf16.mxu0 0
      %869 = vmatpush1.bf16.msra.mxu0 %v737
      %870 = vmatprep.subr.bf16.mxu0 0
      %871 = vmatpush2.bf16.msra.mxu0 0
      %872 = vmatprep.subr.bf16.mxu0 0
      %873 = vmatpush2.bf16.msra.mxu0 0
      %874 = vmatprep.subr.bf16.mxu0 0
      %875 = vmatpush2.bf16.msra.mxu0 0
      %876 = vmatprep.subr.bf16.mxu0 0
      %877 = vmatpush2.bf16.msra.mxu0 0
      %878 = vmatprep.subr.bf16.mxu0 0
      %879 = vmatpush2.bf16.msra.mxu0 0
      %880 = vmatprep.subr.bf16.mxu0 0
      %881 = vmatpush2.bf16.msra.mxu0 0
      %882 = vmatprep.subr.bf16.mxu0 0
      %883 = vmatpush2.bf16.msra.mxu0 0
      %884 = vmatprep.subr.bf16.mxu0 0
      %885 = vmatpush2.bf16.msra.mxu0 0
      %886 = vmatprep.mubr.bf16.mxu0 0
      %887 = vmatmul.mubr.bf16.gmra.mxu0 %v853
      %v888 = vpop.f32.mrf.mxu0
      %v889 = vadd.f32 0.0, %v888
      %v890 = vpop.f32.mrf.mxu0
      %v891 = vpop.f32.mrf.mxu0
      %v892 = vadd.f32 0.0, %v891
      %v893 = vpop.f32.mrf.mxu0
      %894 = vdwg.mxu0
      %s895 = scalar_lea.vmem [#allocation3], 32
      %v896 = vld [vmem:[%s895] sm:$0xff]
      %v897 = vld [vmem:[%s895 + $0x8] sm:$0xff]
      %v898 = vadd.f32 %v896, %v845
      %v899 = vadd.f32 %v897, %v849
      %v900 = vtanh.pop %v898
      %v901 = vtanh.pop %v899
      %v902 = vadd.f32 %v847, %v889
      %v903 = vadd.f32 %v851, %v892
      %v904 = vadd.f32 %v902, %v525
      %v905 = vadd.f32 %v903, %v525
      %v906 = vtanh.pop %v904
      %v907 = vtanh.pop %v905
      %s908 = scalar_lea.vmem [#allocation4], 16
      %909 = vst [vmem:[%s908] sm:$0xff] %v906
      %910 = vst [vmem:[%s908 + $0x8] sm:$0xff] %v907
      %v911 = vpack.c.bf16 %v901, %v900
      %912 = vmatprep.subr.bf16.mxu0 %v596
      %913 = vmatpush1.bf16.msra.mxu0 %v595
      %914 = vmatprep.subr.bf16.mxu0 %v594
      %915 = vmatpush1.bf16.msra.mxu0 %v593
      %916 = vmatprep.subr.bf16.mxu0 %v592
      %917 = vmatpush1.bf16.msra.mxu0 %v591
      %918 = vmatprep.subr.bf16.mxu0 %v590
      %919 = vmatpush1.bf16.msra.mxu0 %v589
      %920 = vmatprep.subr.bf16.mxu0 %v588
      %921 = vmatpush1.bf16.msra.mxu0 %v587
      %922 = vmatprep.subr.bf16.mxu0 %v586
      %923 = vmatpush1.bf16.msra.mxu0 %v585
      %924 = vmatprep.subr.bf16.mxu0 %v584
      %925 = vmatpush1.bf16.msra.mxu0 %v583
      %926 = vmatprep.subr.bf16.mxu0 %v582
      %927 = vmatpush1.bf16.msra.mxu0 %v581
      %928 = vmatprep.subr.bf16.mxu0 0
      %929 = vmatpush2.bf16.msra.mxu0 0
      %930 = vmatprep.subr.bf16.mxu0 0
      %931 = vmatpush2.bf16.msra.mxu0 0
      %932 = vmatprep.subr.bf16.mxu0 0
      %933 = vmatpush2.bf16.msra.mxu0 0
      %934 = vmatprep.subr.bf16.mxu0 0
      %935 = vmatpush2.bf16.msra.mxu0 0
      %936 = vmatprep.subr.bf16.mxu0 0
      %937 = vmatpush2.bf16.msra.mxu0 0
      %938 = vmatprep.subr.bf16.mxu0 0
      %939 = vmatpush2.bf16.msra.mxu0 0
      %940 = vmatprep.subr.bf16.mxu0 0
      %941 = vmatpush2.bf16.msra.mxu0 0
      %942 = vmatprep.subr.bf16.mxu0 0
      %943 = vmatpush2.bf16.msra.mxu0 0
      %944 = vmatprep.mubr.bf16.mxu0 0
      %945 = vmatmul.mubr.bf16.gmra.mxu0 %v911
      %v946 = vpop.f32.mrf.mxu0
      %v947 = vadd.f32 0.0, %v946
      %v948 = vpop.f32.mrf.mxu0
      %v949 = vadd.f32 0.0, %v948
      %v950 = vpop.f32.mrf.mxu0
      %v951 = vadd.f32 0.0, %v950
      %v952 = vpop.f32.mrf.mxu0
      %v953 = vadd.f32 0.0, %v952
      %954 = vdwg.mxu0
      %v955 = vpack.c.bf16 %v907, %v906
      %956 = vmatprep.subr.bf16.mxu0 0
      %957 = vmatpush1.bf16.msra.mxu0 %v744
      %958 = vmatprep.subr.bf16.mxu0 0
      %959 = vmatpush1.bf16.msra.mxu0 %v743
      %960 = vmatprep.subr.bf16.mxu0 0
      %961 = vmatpush1.bf16.msra.mxu0 %v742
      %962 = vmatprep.subr.bf16.mxu0 0
      %963 = vmatpush1.bf16.msra.mxu0 %v741
      %964 = vmatprep.subr.bf16.mxu0 0
      %965 = vmatpush1.bf16.msra.mxu0 %v740
      %966 = vmatprep.subr.bf16.mxu0 0
      %967 = vmatpush1.bf16.msra.mxu0 %v739
      %968 = vmatprep.subr.bf16.mxu0 0
      %969 = vmatpush1.bf16.msra.mxu0 %v738
      %970 = vmatprep.subr.bf16.mxu0 0
      %971 = vmatpush1.bf16.msra.mxu0 %v737
      %972 = vmatprep.subr.bf16.mxu0 0
      %973 = vmatpush2.bf16.msra.mxu0 0
      %974 = vmatprep.subr.bf16.mxu0 0
      %975 = vmatpush2.bf16.msra.mxu0 0
      %976 = vmatprep.subr.bf16.mxu0 0
      %977 = vmatpush2.bf16.msra.mxu0 0
      %978 = vmatprep.subr.bf16.mxu0 0
      %979 = vmatpush2.bf16.msra.mxu0 0
      %980 = vmatprep.subr.bf16.mxu0 0
      %981 = vmatpush2.bf16.msra.mxu0 0
      %982 = vmatprep.subr.bf16.mxu0 0
      %983 = vmatpush2.bf16.msra.mxu0 0
      %984 = vmatprep.subr.bf16.mxu0 0
      %985 = vmatpush2.bf16.msra.mxu0 0
      %986 = vmatprep.subr.bf16.mxu0 0
      %987 = vmatpush2.bf16.msra.mxu0 0
      %988 = vmatprep.mubr.bf16.mxu0 0
      %989 = vmatmul.mubr.bf16.gmra.mxu0 %v955
      %v990 = vpop.f32.mrf.mxu0
      %v991 = vadd.f32 0.0, %v990
      %v992 = vpop.f32.mrf.mxu0
      %v993 = vpop.f32.mrf.mxu0
      %v994 = vadd.f32 0.0, %v993
      %v995 = vpop.f32.mrf.mxu0
      %996 = vdwg.mxu0
      %s997 = scalar_lea.vmem [#allocation3], 48
      %v998 = vld [vmem:[%s997] sm:$0xff]
      %v999 = vld [vmem:[%s997 + $0x8] sm:$0xff]
      %v1000 = vadd.f32 %v998, %v947
      %v1001 = vadd.f32 %v999, %v951
      %v1002 = vtanh.pop %v1000
      %v1003 = vtanh.pop %v1001
      %v1004 = vadd.f32 %v949, %v991
      %v1005 = vadd.f32 %v953, %v994
      %v1006 = vadd.f32 %v1004, %v525
      %v1007 = vadd.f32 %v1005, %v525
      %v1008 = vtanh.pop %v1006
      %v1009 = vtanh.pop %v1007
      %s1010 = scalar_lea.vmem [#allocation4], 32
      %1011 = vst [vmem:[%s1010] sm:$0xff] %v1008
      %1012 = vst [vmem:[%s1010 + $0x8] sm:$0xff] %v1009
      %v1013 = vpack.c.bf16 %v1003, %v1002
      %1014 = vmatprep.subr.bf16.mxu0 %v596
      %1015 = vmatpush1.bf16.msra.mxu0 %v595
      %1016 = vmatprep.subr.bf16.mxu0 %v594
      %1017 = vmatpush1.bf16.msra.mxu0 %v593
      %1018 = vmatprep.subr.bf16.mxu0 %v592
      %1019 = vmatpush1.bf16.msra.mxu0 %v591
      %1020 = vmatprep.subr.bf16.mxu0 %v590
      %1021 = vmatpush1.bf16.msra.mxu0 %v589
      %1022 = vmatprep.subr.bf16.mxu0 %v588
      %1023 = vmatpush1.bf16.msra.mxu0 %v587
      %1024 = vmatprep.subr.bf16.mxu0 %v586
      %1025 = vmatpush1.bf16.msra.mxu0 %v585
      %1026 = vmatprep.subr.bf16.mxu0 %v584
      %1027 = vmatpush1.bf16.msra.mxu0 %v583
      %1028 = vmatprep.subr.bf16.mxu0 %v582
      %1029 = vmatpush1.bf16.msra.mxu0 %v581
      %1030 = vmatprep.subr.bf16.mxu0 0
      %1031 = vmatpush2.bf16.msra.mxu0 0
      %1032 = vmatprep.subr.bf16.mxu0 0
      %1033 = vmatpush2.bf16.msra.mxu0 0
      %1034 = vmatprep.subr.bf16.mxu0 0
      %1035 = vmatpush2.bf16.msra.mxu0 0
      %1036 = vmatprep.subr.bf16.mxu0 0
      %1037 = vmatpush2.bf16.msra.mxu0 0
      %1038 = vmatprep.subr.bf16.mxu0 0
      %1039 = vmatpush2.bf16.msra.mxu0 0
      %1040 = vmatprep.subr.bf16.mxu0 0
      %1041 = vmatpush2.bf16.msra.mxu0 0
      %1042 = vmatprep.subr.bf16.mxu0 0
      %1043 = vmatpush2.bf16.msra.mxu0 0
      %1044 = vmatprep.subr.bf16.mxu0 0
      %1045 = vmatpush2.bf16.msra.mxu0 0
      %1046 = vmatprep.mubr.bf16.mxu0 0
      %1047 = vmatmul.mubr.bf16.gmra.mxu0 %v1013
      %v1048 = vpop.f32.mrf.mxu0
      %v1049 = vpop.f32.mrf.mxu0
      %v1050 = vadd.f32 0.0, %v1049
      %v1051 = vpop.f32.mrf.mxu0
      %v1052 = vpop.f32.mrf.mxu0
      %v1053 = vadd.f32 0.0, %v1052
      %1054 = vdwg.mxu0
      %v1055 = vpack.c.bf16 %v1009, %v1008
      %1056 = vmatprep.subr.bf16.mxu0 0
      %1057 = vmatpush1.bf16.msra.mxu0 %v744
      %1058 = vmatprep.subr.bf16.mxu0 0
      %1059 = vmatpush1.bf16.msra.mxu0 %v743
      %1060 = vmatprep.subr.bf16.mxu0 0
      %1061 = vmatpush1.bf16.msra.mxu0 %v742
      %1062 = vmatprep.subr.bf16.mxu0 0
      %1063 = vmatpush1.bf16.msra.mxu0 %v741
      %1064 = vmatprep.subr.bf16.mxu0 0
      %1065 = vmatpush1.bf16.msra.mxu0 %v740
      %1066 = vmatprep.subr.bf16.mxu0 0
      %1067 = vmatpush1.bf16.msra.mxu0 %v739
      %1068 = vmatprep.subr.bf16.mxu0 0
      %1069 = vmatpush1.bf16.msra.mxu0 %v738
      %1070 = vmatprep.subr.bf16.mxu0 0
      %1071 = vmatpush1.bf16.msra.mxu0 %v737
      %1072 = vmatprep.subr.bf16.mxu0 0
      %1073 = vmatpush2.bf16.msra.mxu0 0
      %1074 = vmatprep.subr.bf16.mxu0 0
      %1075 = vmatpush2.bf16.msra.mxu0 0
      %1076 = vmatprep.subr.bf16.mxu0 0
      %1077 = vmatpush2.bf16.msra.mxu0 0
      %1078 = vmatprep.subr.bf16.mxu0 0
      %1079 = vmatpush2.bf16.msra.mxu0 0
      %1080 = vmatprep.subr.bf16.mxu0 0
      %1081 = vmatpush2.bf16.msra.mxu0 0
      %1082 = vmatprep.subr.bf16.mxu0 0
      %1083 = vmatpush2.bf16.msra.mxu0 0
      %1084 = vmatprep.subr.bf16.mxu0 0
      %1085 = vmatpush2.bf16.msra.mxu0 0
      %1086 = vmatprep.subr.bf16.mxu0 0
      %1087 = vmatpush2.bf16.msra.mxu0 0
      %1088 = vmatprep.mubr.bf16.mxu0 0
      %1089 = vmatmul.mubr.bf16.gmra.mxu0 %v1055
      %v1090 = vpop.f32.mrf.mxu0
      %v1091 = vadd.f32 0.0, %v1090
      %v1092 = vpop.f32.mrf.mxu0
      %v1093 = vpop.f32.mrf.mxu0
      %v1094 = vadd.f32 0.0, %v1093
      %v1095 = vpop.f32.mrf.mxu0
      %1096 = vdwg.mxu0
      %v1097 = vadd.f32 %v1050, %v1091
      %v1098 = vadd.f32 %v1053, %v1094
      %v1099 = vadd.f32 %v1097, %v525
      %v1100 = vadd.f32 %v1098, %v525
      %v1101 = vtanh.pop %v1099
      %v1102 = vtanh.pop %v1100
      %s1103 = scalar_lea.vmem [#allocation4], 48
      %1104 = vst [vmem:[%s1103] sm:$0xff] %v1101
      %1105 = vst [vmem:[%s1103 + $0x8] sm:$0xff] %v1102
      %1106 = vst [vmem:[#allocation2] sm:$0xff] %v1002
      %1107 = vst [vmem:[#allocation2 + $0x8] sm:$0xff] %v1003
      %1108 = vst [vmem:[%s529] sm:$0xff] %v1101
      %1109 = vst [vmem:[%s529 + $0x8] sm:$0xff] %v1102
      %v1110 = vld [vmem:[#allocation4] sm:$0xff]
      %v1111 = vld [vmem:[#allocation4 + $0x8] sm:$0xff]
      %v1112 = vld [vmem:[#allocation4 + $0x10] sm:$0xff]
      %v1113 = vld [vmem:[#allocation4 + $0x18] sm:$0xff]
      %v1114 = vld [vmem:[#allocation4 + $0x20] sm:$0xff]
      %v1115 = vld [vmem:[#allocation4 + $0x28] sm:$0xff]
      %v1116 = vld [vmem:[#allocation4 + $0x30] sm:$0xff]
      %v1117 = vld [vmem:[#allocation4 + $0x38] sm:$0xff]
      %v1118 = vpack.c.bf16 %v1111, %v1110
      %v1119 = vpack.c.bf16 %v1113, %v1112
      %v1120 = vpack.c.bf16 %v1115, %v1114
      %v1121 = vpack.c.bf16 %v1117, %v1116
      %v1122 = vld [vmem:[%s6] sm:$0xf]
      %v1123 = vld [vmem:[%s6 + $0x4] sm:$0xf]
      %v1124 = vld [vmem:[%s6 + $0x8] sm:$0xf]
      %v1125 = vld [vmem:[%s6 + $0xc] sm:$0xf]
      %v1126 = vld [vmem:[%s6 + $0x10] sm:$0xf]
      %v1127 = vld [vmem:[%s6 + $0x14] sm:$0xf]
      %v1128 = vld [vmem:[%s6 + $0x18] sm:$0xf]
      %v1129 = vld [vmem:[%s6 + $0x1c] sm:$0xf]
      %v1130 = vld [vmem:[%s6 + $0x20] sm:$0xf]
      %v1131 = vld [vmem:[%s6 + $0x24] sm:$0xf]
      %v1132 = vld [vmem:[%s6 + $0x28] sm:$0xf]
      %v1133 = vld [vmem:[%s6 + $0x2c] sm:$0xf]
      %v1134 = vld [vmem:[%s6 + $0x30] sm:$0xf]
      %v1135 = vld [vmem:[%s6 + $0x34] sm:$0xf]
      %v1136 = vld [vmem:[%s6 + $0x38] sm:$0xf]
      %v1137 = vld [vmem:[%s6 + $0x3c] sm:$0xf]
      %v1138 = vld [vmem:[%s7] sm:$0x1]
      %v1140 = vlaneseq
      %v1141 = vshrl.u32 %v1140, 7
      %v1142 = vsub.s32 0, %v1141
      %v1143 = vrot.slane %v1138, %v1142
      %v1161 = vunpack.c.l.b16 %v1122
      %v1162 = vunpack.c.l.b16 %v1123
      %v1163 = vunpack.c.l.b16 %v1124
      %v1164 = vunpack.c.l.b16 %v1125
      %v1165 = vunpack.c.l.b16 %v1126
      %v1166 = vunpack.c.l.b16 %v1127
      %v1167 = vunpack.c.l.b16 %v1128
      %v1168 = vunpack.c.l.b16 %v1129
      %v1169 = vunpack.c.l.b16 %v1130
      %v1170 = vunpack.c.l.b16 %v1131
      %v1171 = vunpack.c.l.b16 %v1132
      %v1172 = vunpack.c.l.b16 %v1133
      %v1173 = vunpack.c.l.b16 %v1134
      %v1174 = vunpack.c.l.b16 %v1135
      %v1175 = vunpack.c.l.b16 %v1136
      %v1176 = vunpack.c.l.b16 %v1137
      %v1177 = vpack.c.b16 %v1162, %v1161
      %v1178 = vpack.c.b16 %v1164, %v1163
      %v1179 = vpack.c.b16 %v1166, %v1165
      %v1180 = vpack.c.b16 %v1168, %v1167
      %v1181 = vpack.c.b16 %v1170, %v1169
      %v1182 = vpack.c.b16 %v1172, %v1171
      %v1183 = vpack.c.b16 %v1174, %v1173
      %v1184 = vpack.c.b16 %v1176, %v1175
      %1193 = vmatprep.subr.bf16.mxu0 0
      %1194 = vmatpush1.bf16.msra.mxu0 %v1184
      %1195 = vmatprep.subr.bf16.mxu0 0
      %1196 = vmatpush1.bf16.msra.mxu0 %v1183
      %1197 = vmatprep.subr.bf16.mxu0 0
      %1198 = vmatpush1.bf16.msra.mxu0 %v1182
      %1199 = vmatprep.subr.bf16.mxu0 0
      %1200 = vmatpush1.bf16.msra.mxu0 %v1181
      %1201 = vmatprep.subr.bf16.mxu0 0
      %1202 = vmatpush1.bf16.msra.mxu0 %v1180
      %1203 = vmatprep.subr.bf16.mxu0 0
      %1204 = vmatpush1.bf16.msra.mxu0 %v1179
      %1205 = vmatprep.subr.bf16.mxu0 0
      %1206 = vmatpush1.bf16.msra.mxu0 %v1178
      %1207 = vmatprep.subr.bf16.mxu0 0
      %1208 = vmatpush1.bf16.msra.mxu0 %v1177
      %1209 = vmatprep.subr.bf16.mxu0 0
      %1210 = vmatpush2.bf16.msra.mxu0 0
      %1211 = vmatprep.subr.bf16.mxu0 0
      %1212 = vmatpush2.bf16.msra.mxu0 0
      %1213 = vmatprep.subr.bf16.mxu0 0
      %1214 = vmatpush2.bf16.msra.mxu0 0
      %1215 = vmatprep.subr.bf16.mxu0 0
      %1216 = vmatpush2.bf16.msra.mxu0 0
      %1217 = vmatprep.subr.bf16.mxu0 0
      %1218 = vmatpush2.bf16.msra.mxu0 0
      %1219 = vmatprep.subr.bf16.mxu0 0
      %1220 = vmatpush2.bf16.msra.mxu0 0
      %1221 = vmatprep.subr.bf16.mxu0 0
      %1222 = vmatpush2.bf16.msra.mxu0 0
      %1223 = vmatprep.subr.bf16.mxu0 0
      %1224 = vmatpush2.bf16.msra.mxu0 0
      %1225 = vmatprep.mubr.bf16.mxu0 0
      %1226 = vmatmul.mubr.bf16.gmra.mxu0 %v1118
      %v1227 = vpop.f32.mrf.mxu0
      %v1228 = vadd.f32 %v1143, %v1227
      %v1229 = vpop.f32.mrf.mxu0
      %v1230 = vpop.f32.mrf.mxu0
      %v1231 = vadd.f32 %v1143, %v1230
      %v1232 = vpop.f32.mrf.mxu0
      %1233 = vmatprep.mubr.bf16.mxu0 0
      %1234 = vmatmul.mubr.bf16.gmra.mxu0 %v1119
      %v1235 = vpop.f32.mrf.mxu0
      %v1236 = vadd.f32 %v1143, %v1235
      %v1237 = vpop.f32.mrf.mxu0
      %v1238 = vpop.f32.mrf.mxu0
      %v1239 = vadd.f32 %v1143, %v1238
      %v1240 = vpop.f32.mrf.mxu0
      %1241 = vmatprep.mubr.bf16.mxu0 0
      %1242 = vmatmul.mubr.bf16.gmra.mxu0 %v1120
      %v1243 = vpop.f32.mrf.mxu0
      %v1244 = vadd.f32 %v1143, %v1243
      %v1245 = vpop.f32.mrf.mxu0
      %v1246 = vpop.f32.mrf.mxu0
      %v1247 = vadd.f32 %v1143, %v1246
      %v1248 = vpop.f32.mrf.mxu0
      %1249 = vmatprep.mubr.bf16.mxu0 0
      %1250 = vmatmul.mubr.bf16.gmra.mxu0 %v1121
      %v1251 = vpop.f32.mrf.mxu0
      %v1252 = vadd.f32 %v1143, %v1251
      %v1253 = vpop.f32.mrf.mxu0
      %v1254 = vpop.f32.mrf.mxu0
      %v1255 = vadd.f32 %v1143, %v1254
      %v1256 = vpop.f32.mrf.mxu0
      %1257 = vdwg.mxu0
      %1258 = vst [vmem:[%s350] sm:$0xff] %v1228
      %1259 = vst [vmem:[%s350 + $0x8] sm:$0xff] %v1231
      %1260 = vst [vmem:[%s350 + $0x10] sm:$0xff] %v1236
      %1261 = vst [vmem:[%s350 + $0x18] sm:$0xff] %v1239
      %1262 = vst [vmem:[%s350 + $0x20] sm:$0xff] %v1244
      %1263 = vst [vmem:[%s350 + $0x28] sm:$0xff] %v1247
      %1264 = vst [vmem:[%s350 + $0x30] sm:$0xff] %v1252
      %1265 = vst [vmem:[%s350 + $0x38] sm:$0xff] %v1255
      %s1266 = smul.u32 4, %s24
      %s1267 = smul.u32 2, %s23
      %p1268 = scmp.lt.s32.totalorder %s1266, 7
      %s1269 = scalar_select %p1268, %s1266, 7
      %p1270 = scmp.lt.s32.totalorder %s1267, 1
      %s1271 = scalar_select %p1270, %s1267, 1
      %s1272 = smul.addr %s1269, 2
      %s1273 = sadd.s32 %s1271, %s1272
      %s1274 = smul.addr %s1273, 8
      %s1275 = scalar_lea.vmem %s8, %s1274
      // Predicated region
      $region57: #{rnn_model_forward.1} parent=51 // pred_check
        %p1276 = pneg %p226
      $region58: #{rnn_model_forward.1} parent=51 // pred_check_branch
        %1278 = sbr.rel (%p1276) target = $region60
      $region59: #{rnn_model_forward.1} parent=51 // pred_region
        %s1279 = smul.u32 4, %s24
        %s1280 = smul.u32 2, %s23
      $region60: #{rnn_model_forward.1} parent=51 // pred_fallthru
        _
    $region52: #{rnn_model_forward.1} parent=5 // pred_fallthru
      _
    %p1281 = scmp.le.s32.totalorder 2, %s14
    // Predicated region
    $region61: #{rnn_model_forward.1} parent=5 // pred_check
      %p1282 = pneg %p1281
    $region62: #{rnn_model_forward.1} parent=5 // pred_check_branch
      %1284 = sbr.rel (%p1282) target = $region64
    $region63: #{rnn_model_forward.1} parent=5 // pred_region
      %s1285 = ssub.s32 %s14, 2
      // Predicated region
      $region65: #{rnn_model_forward.1} parent=63 // pred_check
        %p1286 = pneg %p232
      $region66: #{rnn_model_forward.1} parent=63 // pred_check_branch
        %1288 = sbr.rel (%p1286) target = $region68
      $region67: #{rnn_model_forward.1} parent=63 // pred_region
        %s1289 = smul.u32 4, %s26
        %s1290 = smul.u32 2, %s25
        %p1291 = scmp.lt.s32.totalorder %s1289, 7
        %s1292 = scalar_select %p1291, %s1289, 7
        %p1293 = scmp.lt.s32.totalorder %s1290, 1
        %s1294 = scalar_select %p1293, %s1290, 1
        %s1295 = smul.addr %s1292, 2
        %s1296 = sadd.s32 %s1294, %s1295
        %s1297 = smul.addr %s1296, 8
        %s1298 = scalar_lea.vmem %s8, %s1297
      $region68: #{rnn_model_forward.1} parent=63 // pred_fallthru
        _
    $region64: #{rnn_model_forward.1} parent=5 // pred_fallthru
      _
  $region6: #{rnn_model_forward.1} parent=0 // loop_footer
    %s18 = sadd.s32 1, %s14
  $region7: #{rnn_model_forward.1} parent=0 // loop_footer_branch
    %13 = sbr.rel target = $region3
  $region8: #{rnn_model_forward.1} parent=0 // loop_exit
    _

</llo_original>
